<compile_context>
chip_gen: v6e
topology: v6e:2x2x1
jax: 0.10.0
libtpu: 0.0.40
codegen_flags: <defaults>
</compile_context>

<pallas_src>
import jax
import jax.numpy as jnp
from jax.experimental import pallas as pl
from jax.experimental.pallas import tpu as pltpu


def _basicblock_kernel(x_ref, wa_ref, sa_ref, ba_ref, wb_ref, sb_ref, bb_ref,
                       o_ref):
    """One batch element, fully fused basic block.

    x_ref  : (1, H, W, Cin)      NHWC input block (also the residual)
    wa_ref : (9*Cin, Cout)       conv_a weight, im2col layout, bf16
    sa_ref : (1, Cout)           folded bn_a scale (f32)
    ba_ref : (1, Cout)           folded bn_a shift (f32)
    wb_ref : (9*Cout, Cout)      conv_b weight, im2col layout, bf16
    sb_ref : (1, Cout)           folded bn_b scale (f32)
    bb_ref : (1, Cout)           folded bn_b shift (f32)
    o_ref  : (1, H, W, Cout)     output block
    """
    H = o_ref.shape[1]
    W = o_ref.shape[2]
    Cout = o_ref.shape[3]

    def pad_hw(img):
        # (H, W, C) -> (H+2, W+2, C) with a zero halo, built on-chip
        # (no HBM round trip for padding).
        C = img.shape[-1]
        zrow = jnp.zeros((1, W, C), img.dtype)
        zcol = jnp.zeros((H + 2, 1, C), img.dtype)
        p = jnp.concatenate([zrow, img, zrow], axis=0)      # (H+2, W,   C)
        return jnp.concatenate([zcol, p, zcol], axis=1)     # (H+2, W+2, C)

    def conv3x3(img_bf16, w_ref):
        # Full im2col along K: one (H*W, 9*C) x (9*C, Cout) MXU matmul.
        C = img_bf16.shape[-1]
        xp = pad_hw(img_bf16)
        taps = [xp[dy:dy + H, dx:dx + W, :]
                for dy in range(3) for dx in range(3)]       # 9 x (H, W, C)
        patch = jnp.concatenate(taps, axis=-1)               # (H, W, 9*C)
        patch = patch.reshape(H * W, 9 * C)
        return jnp.dot(patch, w_ref[...],
                       preferred_element_type=jnp.float32)   # (H*W, Cout) f32

    x = x_ref[0]                                             # (H, W, Cin)

    # conv_a -> bn_a -> relu   (bf16 MXU inputs, f32 accumulate/epilogue)
    acc_a = conv3x3(x.astype(jnp.bfloat16), wa_ref)
    y = jnp.maximum(acc_a * sa_ref[...] + ba_ref[...], 0.0)  # (H*W, Cout) f32

    # conv_b -> bn_b -> +residual -> relu (intermediate y stays on-chip)
    acc_b = conv3x3(y.reshape(H, W, Cout).astype(jnp.bfloat16), wb_ref)
    z = (acc_b * sb_ref[...] + bb_ref[...]).reshape(H, W, Cout)
    z = z + x.astype(jnp.float32)                            # residual add
    o_ref[0] = jnp.maximum(z, 0.0).astype(o_ref.dtype)


def _im2col_weight(w_hwio):
    """HWIO (3,3,Cin,Cout) -> (9*Cin, Cout) bf16, matching tap order (dy,dx,cin)."""
    kh, kw, cin, cout = w_hwio.shape
    return w_hwio.reshape(kh * kw * cin, cout).astype(jnp.bfloat16)


@jax.jit
def resnet_basicblock_forward(x_nchw, wa, scale_a, shift_a, wb, scale_b, shift_b):
    """Full ResNetBasicblock forward (stride=1, downsample=None, eval-mode BN)."""
    # NCHW (PyTorch) -> NHWC (kernel layout)
    x = jnp.transpose(x_nchw, (0, 2, 3, 1))
    N, H, W, Cin = x.shape
    Cout = wa.shape[-1]

    wa2 = _im2col_weight(wa)          # (9*Cin,  Cout) bf16
    wb2 = _im2col_weight(wb)          # (9*Cout, Cout) bf16

    out = pl.pallas_call(
        _basicblock_kernel,
        out_shape=jax.ShapeDtypeStruct((N, H, W, Cout), x.dtype),
        grid_spec=pltpu.PrefetchScalarGridSpec(
            num_scalar_prefetch=0,
            grid=(N,),
            in_specs=[
                pl.BlockSpec((1, H, W, Cin), lambda n: (n, 0, 0, 0)),
                pl.BlockSpec((9 * Cin, Cout), lambda n: (0, 0)),
                pl.BlockSpec((1, Cout), lambda n: (0, 0)),
                pl.BlockSpec((1, Cout), lambda n: (0, 0)),
                pl.BlockSpec((9 * Cout, Cout), lambda n: (0, 0)),
                pl.BlockSpec((1, Cout), lambda n: (0, 0)),
                pl.BlockSpec((1, Cout), lambda n: (0, 0)),
            ],
            out_specs=pl.BlockSpec((1, H, W, Cout), lambda n: (n, 0, 0, 0)),
        ),
        compiler_params=pltpu.CompilerParams(
            dimension_semantics=("parallel",)),
    )(x, wa2, scale_a, shift_a, wb2, scale_b, shift_b)

    # NHWC -> NCHW
    return jnp.transpose(out, (0, 3, 1, 2))


def _reference_forward(x_nchw, wa, scale_a, shift_a, wb, scale_b, shift_b):
    """Plain-JAX reference with matching bf16 conv inputs / f32 accumulation."""
    x = jnp.transpose(x_nchw, (0, 2, 3, 1))

    def conv(v, w):
        return jax.lax.conv_general_dilated(
            v.astype(jnp.bfloat16), w.astype(jnp.bfloat16),
            window_strides=(1, 1), padding="SAME",
            dimension_numbers=("NHWC", "HWIO", "NHWC"),
            preferred_element_type=jnp.float32)

    y = jnp.maximum(conv(x, wa) * scale_a + shift_a, 0.0)
    z = conv(y, wb) * scale_b + shift_b + x
    out = jnp.maximum(z, 0.0)
    return jnp.transpose(out, (0, 3, 1, 2))


def _fold_bn(gamma, beta, running_mean, running_var, eps=1e-5):
    scale = gamma / jnp.sqrt(running_var + eps)
    shift = beta - running_mean * scale
    return scale.reshape(1, -1), shift.reshape(1, -1)


if __name__ == "__main__":
    key = jax.random.PRNGKey(0)
    keys = jax.random.split(key, 11)

    # Small shapes consistent with the module: inplanes == planes, stride=1.
    N, C, H, W = 2, 4, 16, 16
    planes = C

    x_nchw = jax.random.normal(keys[0], (N, C, H, W), jnp.float32)

    # Conv weights (deterministic init, HWIO layout).
    wa = 0.2 * jax.random.normal(keys[1], (3, 3, C, planes), jnp.float32)
    wb = 0.2 * jax.random.normal(keys[2], (3, 3, planes, planes), jnp.float32)

    # BatchNorm parameters / running stats (non-trivial, deterministic).
    gamma_a = 1.0 + 0.1 * jax.random.normal(keys[3], (planes,), jnp.float32)
    beta_a = 0.1 * jax.random.normal(keys[4], (planes,), jnp.float32)
    mean_a = 0.1 * jax.random.normal(keys[5], (planes,), jnp.float32)
    var_a = 1.0 + 0.2 * jax.random.uniform(keys[6], (planes,), jnp.float32)

    gamma_b = 1.0 + 0.1 * jax.random.normal(keys[7], (planes,), jnp.float32)
    beta_b = 0.1 * jax.random.normal(keys[8], (planes,), jnp.float32)
    mean_b = 0.1 * jax.random.normal(keys[9], (planes,), jnp.float32)
    var_b = 1.0 + 0.2 * jax.random.uniform(keys[10], (planes,), jnp.float32)

    scale_a, shift_a = _fold_bn(gamma_a, beta_a, mean_a, var_a)
    scale_b, shift_b = _fold_bn(gamma_b, beta_b, mean_b, var_b)

    out = resnet_basicblock_forward(
        x_nchw, wa, scale_a, shift_a, wb, scale_b, shift_b)
    out = jax.block_until_ready(out)

    ref = _reference_forward(
        x_nchw, wa, scale_a, shift_a, wb, scale_b, shift_b)

    assert out.shape == (N, planes, H, W)
    # bf16 MXU operands on both sides; tolerance covers accumulation-order diffs.
    assert jnp.allclose(out, ref, atol=2e-2, rtol=2e-2), "mismatch vs reference"

    print("KERNEL_OK")
</pallas_src>

<mosaic_0001>
module attributes {stable_mosaic.version = 11 : i64} {
  func.func @_basicblock_kernel(%arg0: i32, %arg1: memref<1x16x16x4xf32, #tpu.memory_space<vmem>>, %arg2: memref<36x4xbf16, #tpu.memory_space<vmem>>, %arg3: memref<1x4xf32, #tpu.memory_space<vmem>>, %arg4: memref<1x4xf32, #tpu.memory_space<vmem>>, %arg5: memref<36x4xbf16, #tpu.memory_space<vmem>>, %arg6: memref<1x4xf32, #tpu.memory_space<vmem>>, %arg7: memref<1x4xf32, #tpu.memory_space<vmem>>, %arg8: memref<1x16x16x4xf32, #tpu.memory_space<vmem>>) attributes {dimension_semantics = [#tpu.dimension_semantics<parallel>], iteration_bounds = array<i64: 2>, scalar_prefetch = 0 : i64, scratch_operands = 0 : i64, tpu.core_type = #tpu.core_type<tc>, window_params = [{transform_indices = @transform_0, window_bounds = array<i64: 1, 16, 16, 4>}, {pipeline_mode = #tpu.pipeline_mode<synchronous>, transform_indices = @transform_1, window_bounds = array<i64: 36, 4>}, {pipeline_mode = #tpu.pipeline_mode<synchronous>, transform_indices = @transform_2, window_bounds = array<i64: 1, 4>}, {pipeline_mode = #tpu.pipeline_mode<synchronous>, transform_indices = @transform_3, window_bounds = array<i64: 1, 4>}, {pipeline_mode = #tpu.pipeline_mode<synchronous>, transform_indices = @transform_4, window_bounds = array<i64: 36, 4>}, {pipeline_mode = #tpu.pipeline_mode<synchronous>, transform_indices = @transform_5, window_bounds = array<i64: 1, 4>}, {pipeline_mode = #tpu.pipeline_mode<synchronous>, transform_indices = @transform_6, window_bounds = array<i64: 1, 4>}, {transform_indices = @transform_7, window_bounds = array<i64: 1, 16, 16, 4>}]} {
    %c0 = arith.constant 0 : index
    %c0_0 = arith.constant 0 : index
    %c0_1 = arith.constant 0 : index
    %c0_2 = arith.constant 0 : index
    %0 = vector.load %arg1[%c0, %c0_0, %c0_1, %c0_2] : memref<1x16x16x4xf32, #tpu.memory_space<vmem>>, vector<1x16x16x4xf32>
    %1 = vector.shape_cast %0 : vector<1x16x16x4xf32> to vector<16x16x4xf32>
    %2 = arith.truncf %1 : vector<16x16x4xf32> to vector<16x16x4xbf16>
    %cst = arith.constant 0.000000e+00 : bf16
    %3 = vector.broadcast %cst : bf16 to vector<1x16x4xbf16>
    %cst_3 = arith.constant 0.000000e+00 : bf16
    %4 = vector.broadcast %cst_3 : bf16 to vector<18x1x4xbf16>
    %5 = tpu.concatenate %3, %2, %3 in 0 : vector<1x16x4xbf16>, vector<16x16x4xbf16>, vector<1x16x4xbf16> -> vector<18x16x4xbf16>
    %6 = tpu.concatenate %4, %5, %4 in 1 : vector<18x1x4xbf16>, vector<18x16x4xbf16>, vector<18x1x4xbf16> -> vector<18x18x4xbf16>
    %7 = vector.extract_strided_slice %6 {offsets = [0, 0, 0], sizes = [16, 16, 4], strides = [1, 1, 1]} : vector<18x18x4xbf16> to vector<16x16x4xbf16>
    %8 = vector.extract_strided_slice %6 {offsets = [0, 1, 0], sizes = [16, 16, 4], strides = [1, 1, 1]} : vector<18x18x4xbf16> to vector<16x16x4xbf16>
    %9 = vector.extract_strided_slice %6 {offsets = [0, 2, 0], sizes = [16, 16, 4], strides = [1, 1, 1]} : vector<18x18x4xbf16> to vector<16x16x4xbf16>
    %10 = vector.extract_strided_slice %6 {offsets = [1, 0, 0], sizes = [16, 16, 4], strides = [1, 1, 1]} : vector<18x18x4xbf16> to vector<16x16x4xbf16>
    %11 = vector.extract_strided_slice %6 {offsets = [1, 1, 0], sizes = [16, 16, 4], strides = [1, 1, 1]} : vector<18x18x4xbf16> to vector<16x16x4xbf16>
    %12 = vector.extract_strided_slice %6 {offsets = [1, 2, 0], sizes = [16, 16, 4], strides = [1, 1, 1]} : vector<18x18x4xbf16> to vector<16x16x4xbf16>
    %13 = vector.extract_strided_slice %6 {offsets = [2, 0, 0], sizes = [16, 16, 4], strides = [1, 1, 1]} : vector<18x18x4xbf16> to vector<16x16x4xbf16>
    %14 = vector.extract_strided_slice %6 {offsets = [2, 1, 0], sizes = [16, 16, 4], strides = [1, 1, 1]} : vector<18x18x4xbf16> to vector<16x16x4xbf16>
    %15 = vector.extract_strided_slice %6 {offsets = [2, 2, 0], sizes = [16, 16, 4], strides = [1, 1, 1]} : vector<18x18x4xbf16> to vector<16x16x4xbf16>
    %16 = tpu.concatenate %7, %8, %9, %10, %11, %12, %13, %14, %15 in 2 : vector<16x16x4xbf16>, vector<16x16x4xbf16>, vector<16x16x4xbf16>, vector<16x16x4xbf16>, vector<16x16x4xbf16>, vector<16x16x4xbf16>, vector<16x16x4xbf16>, vector<16x16x4xbf16>, vector<16x16x4xbf16> -> vector<16x16x36xbf16>
    %17 = vector.shape_cast %16 : vector<16x16x36xbf16> to vector<256x36xbf16>
    %c0_4 = arith.constant 0 : index
    %c0_5 = arith.constant 0 : index
    %18 = vector.load %arg2[%c0_4, %c0_5] : memref<36x4xbf16, #tpu.memory_space<vmem>>, vector<36x4xbf16>
    %cst_6 = arith.constant dense<0.000000e+00> : vector<256x4xf32>
    %19 = tpu.matmul %17, %18, %cst_6 {dimension_numbers = #tpu.dot_dimension_numbers<[1], [0], [0], [1], [0, 0, 1, 1], [], []>} : vector<256x36xbf16>, vector<36x4xbf16>, vector<256x4xf32> -> vector<256x4xf32>
    %c0_7 = arith.constant 0 : index
    %c0_8 = arith.constant 0 : index
    %20 = vector.load %arg3[%c0_7, %c0_8] : memref<1x4xf32, #tpu.memory_space<vmem>>, vector<1x4xf32>
    %21 = vector.broadcast %20 : vector<1x4xf32> to vector<256x4xf32>
    %22 = arith.mulf %19, %21 : vector<256x4xf32>
    %c0_9 = arith.constant 0 : index
    %c0_10 = arith.constant 0 : index
    %23 = vector.load %arg4[%c0_9, %c0_10] : memref<1x4xf32, #tpu.memory_space<vmem>>, vector<1x4xf32>
    %24 = vector.broadcast %23 : vector<1x4xf32> to vector<256x4xf32>
    %25 = arith.addf %22, %24 : vector<256x4xf32>
    %cst_11 = arith.constant 0.000000e+00 : f32
    %26 = vector.broadcast %cst_11 : f32 to vector<256x4xf32>
    %27 = arith.maximumf %25, %26 : vector<256x4xf32>
    %28 = vector.shape_cast %27 : vector<256x4xf32> to vector<16x16x4xf32>
    %29 = arith.truncf %28 : vector<16x16x4xf32> to vector<16x16x4xbf16>
    %cst_12 = arith.constant 0.000000e+00 : bf16
    %30 = vector.broadcast %cst_12 : bf16 to vector<1x16x4xbf16>
    %cst_13 = arith.constant 0.000000e+00 : bf16
    %31 = vector.broadcast %cst_13 : bf16 to vector<18x1x4xbf16>
    %32 = tpu.concatenate %30, %29, %30 in 0 : vector<1x16x4xbf16>, vector<16x16x4xbf16>, vector<1x16x4xbf16> -> vector<18x16x4xbf16>
    %33 = tpu.concatenate %31, %32, %31 in 1 : vector<18x1x4xbf16>, vector<18x16x4xbf16>, vector<18x1x4xbf16> -> vector<18x18x4xbf16>
    %34 = vector.extract_strided_slice %33 {offsets = [0, 0, 0], sizes = [16, 16, 4], strides = [1, 1, 1]} : vector<18x18x4xbf16> to vector<16x16x4xbf16>
    %35 = vector.extract_strided_slice %33 {offsets = [0, 1, 0], sizes = [16, 16, 4], strides = [1, 1, 1]} : vector<18x18x4xbf16> to vector<16x16x4xbf16>
    %36 = vector.extract_strided_slice %33 {offsets = [0, 2, 0], sizes = [16, 16, 4], strides = [1, 1, 1]} : vector<18x18x4xbf16> to vector<16x16x4xbf16>
    %37 = vector.extract_strided_slice %33 {offsets = [1, 0, 0], sizes = [16, 16, 4], strides = [1, 1, 1]} : vector<18x18x4xbf16> to vector<16x16x4xbf16>
    %38 = vector.extract_strided_slice %33 {offsets = [1, 1, 0], sizes = [16, 16, 4], strides = [1, 1, 1]} : vector<18x18x4xbf16> to vector<16x16x4xbf16>
    %39 = vector.extract_strided_slice %33 {offsets = [1, 2, 0], sizes = [16, 16, 4], strides = [1, 1, 1]} : vector<18x18x4xbf16> to vector<16x16x4xbf16>
    %40 = vector.extract_strided_slice %33 {offsets = [2, 0, 0], sizes = [16, 16, 4], strides = [1, 1, 1]} : vector<18x18x4xbf16> to vector<16x16x4xbf16>
    %41 = vector.extract_strided_slice %33 {offsets = [2, 1, 0], sizes = [16, 16, 4], strides = [1, 1, 1]} : vector<18x18x4xbf16> to vector<16x16x4xbf16>
    %42 = vector.extract_strided_slice %33 {offsets = [2, 2, 0], sizes = [16, 16, 4], strides = [1, 1, 1]} : vector<18x18x4xbf16> to vector<16x16x4xbf16>
    %43 = tpu.concatenate %34, %35, %36, %37, %38, %39, %40, %41, %42 in 2 : vector<16x16x4xbf16>, vector<16x16x4xbf16>, vector<16x16x4xbf16>, vector<16x16x4xbf16>, vector<16x16x4xbf16>, vector<16x16x4xbf16>, vector<16x16x4xbf16>, vector<16x16x4xbf16>, vector<16x16x4xbf16> -> vector<16x16x36xbf16>
    %44 = vector.shape_cast %43 : vector<16x16x36xbf16> to vector<256x36xbf16>
    %c0_14 = arith.constant 0 : index
    %c0_15 = arith.constant 0 : index
    %45 = vector.load %arg5[%c0_14, %c0_15] : memref<36x4xbf16, #tpu.memory_space<vmem>>, vector<36x4xbf16>
    %cst_16 = arith.constant dense<0.000000e+00> : vector<256x4xf32>
    %46 = tpu.matmul %44, %45, %cst_16 {dimension_numbers = #tpu.dot_dimension_numbers<[1], [0], [0], [1], [0, 0, 1, 1], [], []>} : vector<256x36xbf16>, vector<36x4xbf16>, vector<256x4xf32> -> vector<256x4xf32>
    %c0_17 = arith.constant 0 : index
    %c0_18 = arith.constant 0 : index
    %47 = vector.load %arg6[%c0_17, %c0_18] : memref<1x4xf32, #tpu.memory_space<vmem>>, vector<1x4xf32>
    %48 = vector.broadcast %47 : vector<1x4xf32> to vector<256x4xf32>
    %49 = arith.mulf %46, %48 : vector<256x4xf32>
    %c0_19 = arith.constant 0 : index
    %c0_20 = arith.constant 0 : index
    %50 = vector.load %arg7[%c0_19, %c0_20] : memref<1x4xf32, #tpu.memory_space<vmem>>, vector<1x4xf32>
    %51 = vector.broadcast %50 : vector<1x4xf32> to vector<256x4xf32>
    %52 = arith.addf %49, %51 : vector<256x4xf32>
    %53 = vector.shape_cast %52 : vector<256x4xf32> to vector<16x16x4xf32>
    %54 = arith.addf %53, %1 : vector<16x16x4xf32>
    %cst_21 = arith.constant 0.000000e+00 : f32
    %55 = vector.broadcast %cst_21 : f32 to vector<16x16x4xf32>
    %56 = arith.maximumf %54, %55 : vector<16x16x4xf32>
    %c0_22 = arith.constant 0 : index
    %c0_23 = arith.constant 0 : index
    %c0_24 = arith.constant 0 : index
    %c0_25 = arith.constant 0 : index
    %57 = vector.load %arg8[%c0_22, %c0_23, %c0_24, %c0_25] : memref<1x16x16x4xf32, #tpu.memory_space<vmem>>, vector<1x16x16x4xf32>
    %58 = vector.shape_cast %57 : vector<1x16x16x4xf32> to vector<16x16x4xf32>
    %59 = vector.shape_cast %56 : vector<16x16x4xf32> to vector<1x16x16x4xf32>
    tpu.vector_store %arg8[%c0_22, %c0_23, %c0_24, %c0_25], %59 {strides = array<i32>} : memref<1x16x16x4xf32, #tpu.memory_space<vmem>>, vector<1x16x16x4xf32>,
    return
  }
  func.func @transform_0(%arg0: i32) -> (i32, i32, i32, i32) {
    %c0_i32 = arith.constant 0 : i32
    %c0_i32_0 = arith.constant 0 : i32
    %c0_i32_1 = arith.constant 0 : i32
    %c0_i32_2 = arith.constant 0 : i32
    return %arg0, %c0_i32, %c0_i32_0, %c0_i32_1 : i32, i32, i32, i32
  }
  func.func @transform_1(%arg0: i32) -> (i32, i32) {
    %c0_i32 = arith.constant 0 : i32
    %c0_i32_0 = arith.constant 0 : i32
    %c0_i32_1 = arith.constant 0 : i32
    return %c0_i32, %c0_i32_0 : i32, i32
  }
  func.func @transform_2(%arg0: i32) -> (i32, i32) {
    %c0_i32 = arith.constant 0 : i32
    %c0_i32_0 = arith.constant 0 : i32
    %c0_i32_1 = arith.constant 0 : i32
    return %c0_i32, %c0_i32_0 : i32, i32
  }
  func.func @transform_3(%arg0: i32) -> (i32, i32) {
    %c0_i32 = arith.constant 0 : i32
    %c0_i32_0 = arith.constant 0 : i32
    %c0_i32_1 = arith.constant 0 : i32
    return %c0_i32, %c0_i32_0 : i32, i32
  }
  func.func @transform_4(%arg0: i32) -> (i32, i32) {
    %c0_i32 = arith.constant 0 : i32
    %c0_i32_0 = arith.constant 0 : i32
    %c0_i32_1 = arith.constant 0 : i32
    return %c0_i32, %c0_i32_0 : i32, i32
  }
  func.func @transform_5(%arg0: i32) -> (i32, i32) {
    %c0_i32 = arith.constant 0 : i32
    %c0_i32_0 = arith.constant 0 : i32
    %c0_i32_1 = arith.constant 0 : i32
    return %c0_i32, %c0_i32_0 : i32, i32
  }
  func.func @transform_6(%arg0: i32) -> (i32, i32) {
    %c0_i32 = arith.constant 0 : i32
    %c0_i32_0 = arith.constant 0 : i32
    %c0_i32_1 = arith.constant 0 : i32
    return %c0_i32, %c0_i32_0 : i32, i32
  }
  func.func @transform_7(%arg0: i32) -> (i32, i32, i32, i32) {
    %c0_i32 = arith.constant 0 : i32
    %c0_i32_0 = arith.constant 0 : i32
    %c0_i32_1 = arith.constant 0 : i32
    %c0_i32_2 = arith.constant 0 : i32
    return %arg0, %c0_i32, %c0_i32_0, %c0_i32_1 : i32, i32, i32, i32
  }
}

</mosaic_0001>

<llo_original>
// kernel: resnet_basicblock_forward.1
$region0: #{resnet_basicblock_forward.1}
  #allocation0 [shape = 'u32[]', space=smem, size = 0x4, offset = 0x4, fixed_abs, tag = 'smem constant byte address 0x4 - core index']
  #allocation1 [shape = 'u32[144,128]{1,0:T(1,128)}', space=vmem, size = 0x12000, scoped, tag = 'internal scratch']
  %s0 = inlined_call_operand.vmem [shape: f32[2,16,16,4], index: 0, kind: input, shape index: {}]
  %s1 = inlined_call_operand.vmem [shape: bf16[36,4], index: 1, kind: input, shape index: {}]
  %s2 = inlined_call_operand.vmem [shape: f32[1,4], index: 2, kind: input, shape index: {}]
  %s3 = inlined_call_operand.vmem [shape: f32[1,4], index: 3, kind: input, shape index: {}]
  %s4 = inlined_call_operand.vmem [shape: bf16[36,4], index: 4, kind: input, shape index: {}]
  %s5 = inlined_call_operand.vmem [shape: f32[1,4], index: 5, kind: input, shape index: {}]
  %s6 = inlined_call_operand.vmem [shape: f32[1,4], index: 6, kind: input, shape index: {}]
  %s7 = inlined_call_operand.vmem [shape: f32[2,16,16,4], index: 7, kind: output, shape index: {}]
  %s8 = sld [smem:[#allocation0]]
  $region61: #{resnet_basicblock_forward.1} parent=0
    _
  %s10 = ssub.s32 1, %s8
  %s11 = scalar_select 0, %s10, %s8
  loop: start=0, step=1, limit=4
  $region2: #{resnet_basicblock_forward.1} parent=0 // loop_pre_header
    _
  $region3: #{resnet_basicblock_forward.1} parent=0 // loop_header
    %s13 = sphi 0, %s17
    %p14 = scmp.ge.s32.totalorder %s13, 4
    %s23 = sphi 0, %s25
    %s26 = sphi 0, %s23
    %s27 = sphi 0, %s26
    %s43 = sphi 0, %s27
    %s47 = sphi 0, %s47
    %s49 = sphi 0, %s47
    %s50 = sphi 0, %s49
    %s64 = sphi 0, %s50
    %s68 = sphi 0, %s68
    %s70 = sphi 0, %s68
    %s71 = sphi 0, %s70
    %s85 = sphi 0, %s71
    %s89 = sphi 0, %s89
    %s91 = sphi 0, %s89
    %s92 = sphi 0, %s91
    %s106 = sphi 0, %s92
    %s110 = sphi 0, %s110
    %s112 = sphi 0, %s110
    %s113 = sphi 0, %s112
    %s127 = sphi 0, %s113
    %s131 = sphi 0, %s131
    %s133 = sphi 0, %s131
    %s134 = sphi 0, %s133
    %s148 = sphi 0, %s134
    %s152 = sphi 0, %s152
    %s154 = sphi 0, %s152
    %s155 = sphi 0, %s154
    %s169 = sphi 0, %s155
    %s175 = sphi 0, %s177
    %s178 = sphi 0, %s175
    %s179 = sphi 0, %s178
    %s195 = sphi 0, %s179
  $region4: #{resnet_basicblock_forward.1} parent=0 // loop_header_branch
    %16 = sbr.rel (%p14) target = $region8
  $region5: #{resnet_basicblock_forward.1} parent=0 // loop_body
    %s18 = ssub.s32 %s13, 1
    %s19 = ssub.s32 %s13, 2
    %s20 = sadd.s32 %s13, 1
    %s21 = ssub.s32 %s13, %s20
    %p22 = scmp.eq.s32.totalorder %s21, 0
    %s24 = sadd.s32 %s23, 1
    %s25 = scalar_select %p22, %s23, %s24
    %p28 = pneg %p22
    %p29 = scmp.eq.s32.totalorder %s13, 1
    %p30 = por %p28, %p29
    %p31 = scmp.ne.s32.totalorder %s23, %s26
    %p32 = scmp.eq.s32.totalorder %s13, 0
    %p33 = por %p31, %p32
    %p34 = scmp.ne.s32.totalorder %s23, %s26
    %p35 = scmp.eq.s32.totalorder %s18, 1
    %p36 = por %p34, %p35
    %p37 = scmp.ne.s32.totalorder %s26, %s27
    %p38 = scmp.eq.s32.totalorder %s18, 0
    %p39 = por %p37, %p38
    %p40 = scmp.ne.s32.totalorder %s26, %s27
    %p41 = scmp.eq.s32.totalorder %s19, 1
    %p42 = por %p40, %p41
    %p44 = scmp.ne.s32.totalorder %s27, %s43
    %p45 = scmp.eq.s32.totalorder %s19, 0
    %p46 = por %p44, %p45
    %s48 = sadd.s32 %s47, 1
    %p51 = scmp.eq.s32.totalorder %s13, 1
    %p52 = scmp.ne.s32.totalorder %s47, %s49
    %p53 = scmp.eq.s32.totalorder %s13, 0
    %p54 = por %p52, %p53
    %p55 = scmp.ne.s32.totalorder %s47, %s49
    %p56 = scmp.eq.s32.totalorder %s18, 1
    %p57 = por %p55, %p56
    %p58 = scmp.ne.s32.totalorder %s49, %s50
    %p59 = scmp.eq.s32.totalorder %s18, 0
    %p60 = por %p58, %p59
    %p61 = scmp.ne.s32.totalorder %s49, %s50
    %p62 = scmp.eq.s32.totalorder %s19, 1
    %p63 = por %p61, %p62
    %p65 = scmp.ne.s32.totalorder %s50, %s64
    %p66 = scmp.eq.s32.totalorder %s19, 0
    %p67 = por %p65, %p66
    %s69 = sadd.s32 %s68, 1
    %p72 = scmp.eq.s32.totalorder %s13, 1
    %p73 = scmp.ne.s32.totalorder %s68, %s70
    %p74 = scmp.eq.s32.totalorder %s13, 0
    %p75 = por %p73, %p74
    %p76 = scmp.ne.s32.totalorder %s68, %s70
    %p77 = scmp.eq.s32.totalorder %s18, 1
    %p78 = por %p76, %p77
    %p79 = scmp.ne.s32.totalorder %s70, %s71
    %p80 = scmp.eq.s32.totalorder %s18, 0
    %p81 = por %p79, %p80
    %p82 = scmp.ne.s32.totalorder %s70, %s71
    %p83 = scmp.eq.s32.totalorder %s19, 1
    %p84 = por %p82, %p83
    %p86 = scmp.ne.s32.totalorder %s71, %s85
    %p87 = scmp.eq.s32.totalorder %s19, 0
    %p88 = por %p86, %p87
    %s90 = sadd.s32 %s89, 1
    %p93 = scmp.eq.s32.totalorder %s13, 1
    %p94 = scmp.ne.s32.totalorder %s89, %s91
    %p95 = scmp.eq.s32.totalorder %s13, 0
    %p96 = por %p94, %p95
    %p97 = scmp.ne.s32.totalorder %s89, %s91
    %p98 = scmp.eq.s32.totalorder %s18, 1
    %p99 = por %p97, %p98
    %p100 = scmp.ne.s32.totalorder %s91, %s92
    %p101 = scmp.eq.s32.totalorder %s18, 0
    %p102 = por %p100, %p101
    %p103 = scmp.ne.s32.totalorder %s91, %s92
    %p104 = scmp.eq.s32.totalorder %s19, 1
    %p105 = por %p103, %p104
    %p107 = scmp.ne.s32.totalorder %s92, %s106
    %p108 = scmp.eq.s32.totalorder %s19, 0
    %p109 = por %p107, %p108
    %s111 = sadd.s32 %s110, 1
    %p114 = scmp.eq.s32.totalorder %s13, 1
    %p115 = scmp.ne.s32.totalorder %s110, %s112
    %p116 = scmp.eq.s32.totalorder %s13, 0
    %p117 = por %p115, %p116
    %p118 = scmp.ne.s32.totalorder %s110, %s112
    %p119 = scmp.eq.s32.totalorder %s18, 1
    %p120 = por %p118, %p119
    %p121 = scmp.ne.s32.totalorder %s112, %s113
    %p122 = scmp.eq.s32.totalorder %s18, 0
    %p123 = por %p121, %p122
    %p124 = scmp.ne.s32.totalorder %s112, %s113
    %p125 = scmp.eq.s32.totalorder %s19, 1
    %p126 = por %p124, %p125
    %p128 = scmp.ne.s32.totalorder %s113, %s127
    %p129 = scmp.eq.s32.totalorder %s19, 0
    %p130 = por %p128, %p129
    %s132 = sadd.s32 %s131, 1
    %p135 = scmp.eq.s32.totalorder %s13, 1
    %p136 = scmp.ne.s32.totalorder %s131, %s133
    %p137 = scmp.eq.s32.totalorder %s13, 0
    %p138 = por %p136, %p137
    %p139 = scmp.ne.s32.totalorder %s131, %s133
    %p140 = scmp.eq.s32.totalorder %s18, 1
    %p141 = por %p139, %p140
    %p142 = scmp.ne.s32.totalorder %s133, %s134
    %p143 = scmp.eq.s32.totalorder %s18, 0
    %p144 = por %p142, %p143
    %p145 = scmp.ne.s32.totalorder %s133, %s134
    %p146 = scmp.eq.s32.totalorder %s19, 1
    %p147 = por %p145, %p146
    %p149 = scmp.ne.s32.totalorder %s134, %s148
    %p150 = scmp.eq.s32.totalorder %s19, 0
    %p151 = por %p149, %p150
    %s153 = sadd.s32 %s152, 1
    %p156 = scmp.eq.s32.totalorder %s13, 1
    %p157 = scmp.ne.s32.totalorder %s152, %s154
    %p158 = scmp.eq.s32.totalorder %s13, 0
    %p159 = por %p157, %p158
    %p160 = scmp.ne.s32.totalorder %s152, %s154
    %p161 = scmp.eq.s32.totalorder %s18, 1
    %p162 = por %p160, %p161
    %p163 = scmp.ne.s32.totalorder %s154, %s155
    %p164 = scmp.eq.s32.totalorder %s18, 0
    %p165 = por %p163, %p164
    %p166 = scmp.ne.s32.totalorder %s154, %s155
    %p167 = scmp.eq.s32.totalorder %s19, 1
    %p168 = por %p166, %p167
    %p170 = scmp.ne.s32.totalorder %s155, %s169
    %p171 = scmp.eq.s32.totalorder %s19, 0
    %p172 = por %p170, %p171
    %s173 = ssub.s32 %s13, %s20
    %p174 = scmp.eq.s32.totalorder %s173, 0
    %s176 = sadd.s32 %s175, 1
    %s177 = scalar_select %p174, %s175, %s176
    %p180 = pneg %p174
    %p181 = scmp.eq.s32.totalorder %s13, 1
    %p182 = por %p180, %p181
    %p183 = scmp.ne.s32.totalorder %s175, %s178
    %p184 = scmp.eq.s32.totalorder %s13, 0
    %p185 = por %p183, %p184
    %p186 = scmp.ne.s32.totalorder %s175, %s178
    %p187 = scmp.eq.s32.totalorder %s18, 1
    %p188 = por %p186, %p187
    %p189 = scmp.ne.s32.totalorder %s178, %s179
    %p190 = scmp.eq.s32.totalorder %s18, 0
    %p191 = por %p189, %p190
    %p192 = scmp.ne.s32.totalorder %s178, %s179
    %p193 = scmp.eq.s32.totalorder %s19, 1
    %p194 = por %p192, %p193
    %p196 = scmp.ne.s32.totalorder %s179, %s195
    %p197 = scmp.eq.s32.totalorder %s19, 0
    %p198 = por %p196, %p197
    %p199 = scmp.le.s32.totalorder 1, %s13
    %p200 = scmp.lt.s32.totalorder %s13, 3
    %p201 = pnand %p199, %p200
    %p202 = pneg %p201
    // Predicated region
    $region9: #{resnet_basicblock_forward.1} parent=5 // pred_check
      _
    $region10: #{resnet_basicblock_forward.1} parent=5 // pred_check_branch
      %204 = sbr.rel (%p201) target = $region12
    $region11: #{resnet_basicblock_forward.1} parent=5 // pred_region
      %s205 = ssub.s32 %s13, 1
      // Predicated region
      $region13: #{resnet_basicblock_forward.1} parent=11 // pred_check
        %p206 = pneg %p60
      $region14: #{resnet_basicblock_forward.1} parent=11 // pred_check_branch
        %208 = sbr.rel (%p206) target = $region16
      $region15: #{resnet_basicblock_forward.1} parent=11 // pred_region
        _
      $region16: #{resnet_basicblock_forward.1} parent=11 // pred_fallthru
        _
      // Predicated region
      $region17: #{resnet_basicblock_forward.1} parent=11 // pred_check
        %p209 = pneg %p81
      $region18: #{resnet_basicblock_forward.1} parent=11 // pred_check_branch
        %211 = sbr.rel (%p209) target = $region20
      $region19: #{resnet_basicblock_forward.1} parent=11 // pred_region
        _
      $region20: #{resnet_basicblock_forward.1} parent=11 // pred_fallthru
        _
      // Predicated region
      $region21: #{resnet_basicblock_forward.1} parent=11 // pred_check
        %p212 = pneg %p102
      $region22: #{resnet_basicblock_forward.1} parent=11 // pred_check_branch
        %214 = sbr.rel (%p212) target = $region24
      $region23: #{resnet_basicblock_forward.1} parent=11 // pred_region
        _
      $region24: #{resnet_basicblock_forward.1} parent=11 // pred_fallthru
        _
      // Predicated region
      $region25: #{resnet_basicblock_forward.1} parent=11 // pred_check
        %p215 = pneg %p123
      $region26: #{resnet_basicblock_forward.1} parent=11 // pred_check_branch
        %217 = sbr.rel (%p215) target = $region28
      $region27: #{resnet_basicblock_forward.1} parent=11 // pred_region
        _
      $region28: #{resnet_basicblock_forward.1} parent=11 // pred_fallthru
        _
      // Predicated region
      $region29: #{resnet_basicblock_forward.1} parent=11 // pred_check
        %p218 = pneg %p144
      $region30: #{resnet_basicblock_forward.1} parent=11 // pred_check_branch
        %220 = sbr.rel (%p218) target = $region32
      $region31: #{resnet_basicblock_forward.1} parent=11 // pred_region
        _
      $region32: #{resnet_basicblock_forward.1} parent=11 // pred_fallthru
        _
      // Predicated region
      $region33: #{resnet_basicblock_forward.1} parent=11 // pred_check
        %p221 = pneg %p165
      $region34: #{resnet_basicblock_forward.1} parent=11 // pred_check_branch
        %223 = sbr.rel (%p221) target = $region36
      $region35: #{resnet_basicblock_forward.1} parent=11 // pred_region
        _
      $region36: #{resnet_basicblock_forward.1} parent=11 // pred_fallthru
        _
    $region12: #{resnet_basicblock_forward.1} parent=5 // pred_fallthru
      _
    %p224 = scmp.lt.s32.totalorder %s13, 2
    // Predicated region
    $region37: #{resnet_basicblock_forward.1} parent=5 // pred_check
      %p225 = pneg %p224
    $region38: #{resnet_basicblock_forward.1} parent=5 // pred_check_branch
      %227 = sbr.rel (%p225) target = $region40
    $region39: #{resnet_basicblock_forward.1} parent=5 // pred_region
      // Predicated region
      $region41: #{resnet_basicblock_forward.1} parent=39 // pred_check
        %p228 = pneg %p33
      $region42: #{resnet_basicblock_forward.1} parent=39 // pred_check_branch
        %230 = sbr.rel (%p228) target = $region44
      $region43: #{resnet_basicblock_forward.1} parent=39 // pred_region
        %p231 = scmp.lt.s32.totalorder %s13, 1
        %s232 = scalar_select %p231, %s13, 1
        %s233 = smul.addr %s232, 32
        %s234 = smul.addr %s233, 8
        %s235 = scalar_lea.vmem %s0, %s234
      $region44: #{resnet_basicblock_forward.1} parent=39 // pred_fallthru
        _
    $region40: #{resnet_basicblock_forward.1} parent=5 // pred_fallthru
      _
    %p236 = scmp.le.s32.totalorder 1, %s13
    %p237 = scmp.lt.s32.totalorder %s13, 3
    %p238 = pnand %p236, %p237
    %p239 = pneg %p238
    // Predicated region
    $region45: #{resnet_basicblock_forward.1} parent=5 // pred_check
      _
    $region46: #{resnet_basicblock_forward.1} parent=5 // pred_check_branch
      %241 = sbr.rel (%p238) target = $region48
    $region47: #{resnet_basicblock_forward.1} parent=5 // pred_region
      %s242 = ssub.s32 %s13, 1
      %p243 = scmp.lt.s32.totalorder %s18, 1
      %s244 = scalar_select %p243, %s18, 1
      %s245 = smul.addr %s244, 32
      %s246 = smul.addr %s245, 8
      %s247 = scalar_lea.vmem %s0, %s246
      %p248 = pneg %p39
      %p249 = pneg %p36
      %p250 = pneg %p60
      %p251 = pneg %p57
      %p252 = pneg %p81
      %p253 = pneg %p78
      %p254 = pneg %p102
      %p255 = pneg %p99
      %p256 = pneg %p123
      %p257 = pneg %p120
      %p258 = pneg %p144
      %p259 = pneg %p141
      %p260 = pneg %p165
      %p261 = pneg %p162
      %p262 = pneg %p191
      %p263 = pneg %p188
      %p264 = scmp.lt.s32.totalorder %s18, 1
      %s265 = scalar_select %p264, %s18, 1
      %s266 = smul.addr %s265, 32
      %s267 = smul.addr %s266, 8
      %s268 = scalar_lea.vmem %s7, %s267
      %p269 = scmp.lt.s32.totalorder %s18, 1
      %s270 = scalar_select %p269, %s18, 1
      %s271 = smul.addr %s270, 32
      %s272 = smul.addr %s271, 8
      %s273 = scalar_lea.vmem %s0, %s272
      %p274 = scmp.lt.s32.totalorder %s18, 1
      %s275 = scalar_select %p274, %s18, 1
      %s276 = smul.addr %s275, 32
      %s277 = smul.addr %s276, 8
      %s278 = scalar_lea.vmem %s7, %s277
      %v280 = vld [vmem:[%s273] sm:$0xff]
      %v281 = vld [vmem:[%s273 + $0x8] sm:$0xff]
      %v282 = vld [vmem:[%s273 + $0x10] sm:$0xff]
      %v283 = vld [vmem:[%s273 + $0x18] sm:$0xff]
      %v284 = vld [vmem:[%s273 + $0x20] sm:$0xff]
      %v285 = vld [vmem:[%s273 + $0x28] sm:$0xff]
      %v286 = vld [vmem:[%s273 + $0x30] sm:$0xff]
      %v287 = vld [vmem:[%s273 + $0x38] sm:$0xff]
      %v288 = vld [vmem:[%s273 + $0x40] sm:$0xff]
      %v289 = vld [vmem:[%s273 + $0x48] sm:$0xff]
      %v290 = vld [vmem:[%s273 + $0x50] sm:$0xff]
      %v291 = vld [vmem:[%s273 + $0x58] sm:$0xff]
      %v292 = vld [vmem:[%s273 + $0x60] sm:$0xff]
      %v293 = vld [vmem:[%s273 + $0x68] sm:$0xff]
      %v294 = vld [vmem:[%s273 + $0x70] sm:$0xff]
      %v295 = vld [vmem:[%s273 + $0x78] sm:$0xff]
      %v296 = vld [vmem:[%s273 + $0x80] sm:$0xff]
      %v297 = vld [vmem:[%s273 + $0x88] sm:$0xff]
      %v298 = vld [vmem:[%s273 + $0x90] sm:$0xff]
      %v299 = vld [vmem:[%s273 + $0x98] sm:$0xff]
      %v300 = vld [vmem:[%s273 + $0xa0] sm:$0xff]
      %v301 = vld [vmem:[%s273 + $0xa8] sm:$0xff]
      %v302 = vld [vmem:[%s273 + $0xb0] sm:$0xff]
      %v303 = vld [vmem:[%s273 + $0xb8] sm:$0xff]
      %v304 = vld [vmem:[%s273 + $0xc0] sm:$0xff]
      %v305 = vld [vmem:[%s273 + $0xc8] sm:$0xff]
      %v306 = vld [vmem:[%s273 + $0xd0] sm:$0xff]
      %v307 = vld [vmem:[%s273 + $0xd8] sm:$0xff]
      %v308 = vld [vmem:[%s273 + $0xe0] sm:$0xff]
      %v309 = vld [vmem:[%s273 + $0xe8] sm:$0xff]
      %v310 = vld [vmem:[%s273 + $0xf0] sm:$0xff]
      %v311 = vld [vmem:[%s273 + $0xf8] sm:$0xff]
      %v312 = vpack.c.bf16 %v281, %v280
      %v313 = vpack.c.bf16 %v283, %v282
      %v314 = vpack.c.bf16 %v285, %v284
      %v315 = vpack.c.bf16 %v287, %v286
      %v316 = vpack.c.bf16 %v289, %v288
      %v317 = vpack.c.bf16 %v291, %v290
      %v318 = vpack.c.bf16 %v293, %v292
      %v319 = vpack.c.bf16 %v295, %v294
      %v320 = vpack.c.bf16 %v297, %v296
      %v321 = vpack.c.bf16 %v299, %v298
      %v322 = vpack.c.bf16 %v301, %v300
      %v323 = vpack.c.bf16 %v303, %v302
      %v324 = vpack.c.bf16 %v305, %v304
      %v325 = vpack.c.bf16 %v307, %v306
      %v326 = vpack.c.bf16 %v309, %v308
      %v327 = vpack.c.bf16 %v311, %v310
      %v329 = vshrl.u32 0, 16
      %v331 = vrot.slane %v329, 7
      %v332 = vshll.u32 0, 16
      %v334 = vor.u32 %v331, %v332
      %v336 = vshrl.u32 %v312, 16
      %v338 = vrot.slane %v336, 7
      %v339 = vshll.u32 %v312, 16
      %v341 = vor.u32 %v338, %v339
      %v343 = vshrl.u32 %v313, 16
      %v345 = vrot.slane %v343, 7
      %v346 = vshll.u32 %v313, 16
      %v348 = vor.u32 %v345, %v346
      %v350 = vshrl.u32 %v314, 16
      %v352 = vrot.slane %v350, 7
      %v353 = vshll.u32 %v314, 16
      %v355 = vor.u32 %v352, %v353
      %v357 = vshrl.u32 %v315, 16
      %v359 = vrot.slane %v357, 7
      %v360 = vshll.u32 %v315, 16
      %v362 = vor.u32 %v359, %v360
      %v364 = vshrl.u32 %v316, 16
      %v366 = vrot.slane %v364, 7
      %v367 = vshll.u32 %v316, 16
      %v369 = vor.u32 %v366, %v367
      %v371 = vshrl.u32 %v317, 16
      %v373 = vrot.slane %v371, 7
      %v374 = vshll.u32 %v317, 16
      %v376 = vor.u32 %v373, %v374
      %v378 = vshrl.u32 %v318, 16
      %v380 = vrot.slane %v378, 7
      %v381 = vshll.u32 %v318, 16
      %v383 = vor.u32 %v380, %v381
      %v385 = vshrl.u32 %v319, 16
      %v387 = vrot.slane %v385, 7
      %v388 = vshll.u32 %v319, 16
      %v390 = vor.u32 %v387, %v388
      %v392 = vshrl.u32 %v320, 16
      %v394 = vrot.slane %v392, 7
      %v395 = vshll.u32 %v320, 16
      %v397 = vor.u32 %v394, %v395
      %v399 = vshrl.u32 %v321, 16
      %v401 = vrot.slane %v399, 7
      %v402 = vshll.u32 %v321, 16
      %v404 = vor.u32 %v401, %v402
      %v406 = vshrl.u32 %v322, 16
      %v408 = vrot.slane %v406, 7
      %v409 = vshll.u32 %v322, 16
      %v411 = vor.u32 %v408, %v409
      %v413 = vshrl.u32 %v323, 16
      %v415 = vrot.slane %v413, 7
      %v416 = vshll.u32 %v323, 16
      %v418 = vor.u32 %v415, %v416
      %v420 = vshrl.u32 %v324, 16
      %v422 = vrot.slane %v420, 7
      %v423 = vshll.u32 %v324, 16
      %v425 = vor.u32 %v422, %v423
      %v427 = vshrl.u32 %v325, 16
      %v429 = vrot.slane %v427, 7
      %v430 = vshll.u32 %v325, 16
      %v432 = vor.u32 %v429, %v430
      %v434 = vshrl.u32 %v326, 16
      %v436 = vrot.slane %v434, 7
      %v437 = vshll.u32 %v326, 16
      %v439 = vor.u32 %v436, %v437
      %v441 = vshrl.u32 %v327, 16
      %v443 = vrot.slane %v441, 7
      %v444 = vshll.u32 %v327, 16
      %v446 = vor.u32 %v443, %v444
      %vm481 = vcmask 1040384
      %vm482 = vsmask.f32 256
      %vm483 = vmand %vm481, %vm482
      %v484 = vsel %vm483, 0, %v334
      %v485 = vsel %vm483, 0, %v341
      %v486 = vsel %vm483, 0, %v348
      %v487 = vsel %vm483, 0, %v355
      %v488 = vsel %vm483, 0, %v362
      %v489 = vsel %vm483, 0, %v369
      %v490 = vsel %vm483, 0, %v376
      %v491 = vsel %vm483, 0, %v383
      %v492 = vsel %vm483, 0, %v390
      %v493 = vsel %vm483, 0, %v397
      %v494 = vsel %vm483, 0, %v404
      %v495 = vsel %vm483, 0, %v411
      %v496 = vsel %vm483, 0, %v418
      %v497 = vsel %vm483, 0, %v425
      %v498 = vsel %vm483, 0, %v432
      %v499 = vsel %vm483, 0, %v439
      %v500 = vsel %vm483, 0, %v446
      %v501 = vsel %vm483, %v331, 0
      %v502 = vsel %vm483, %v338, 0
      %v503 = vsel %vm483, %v345, 0
      %v504 = vsel %vm483, %v352, 0
      %v505 = vsel %vm483, %v359, 0
      %v506 = vsel %vm483, %v366, 0
      %v507 = vsel %vm483, %v373, 0
      %v508 = vsel %vm483, %v380, 0
      %v509 = vsel %vm483, %v387, 0
      %v510 = vsel %vm483, %v394, 0
      %v511 = vsel %vm483, %v401, 0
      %v512 = vsel %vm483, %v408, 0
      %v513 = vsel %vm483, %v415, 0
      %v514 = vsel %vm483, %v422, 0
      %v515 = vsel %vm483, %v429, 0
      %v516 = vsel %vm483, %v436, 0
      %v517 = vsel %vm483, %v443, 0
      %vm518 = vsmask.f32 7424
      %v520 = vshrl.u32 %v484, 16
      %v522 = vshll.u32 %v484, 16
      %v524 = vrot.slane %v522, 1
      %v525 = vor.u32 %v520, %v524
      %v527 = vshll.u32 %v501, 16
      %v529 = vrot.slane %v527, 1
      %v530 = vsel %vm518, %v525, %v529
      %v532 = vshrl.u32 %v485, 16
      %v534 = vshll.u32 %v485, 16
      %v536 = vrot.slane %v534, 1
      %v537 = vor.u32 %v532, %v536
      %v539 = vshll.u32 %v502, 16
      %v541 = vrot.slane %v539, 1
      %v542 = vsel %vm518, %v537, %v541
      %v544 = vshrl.u32 %v486, 16
      %v546 = vshll.u32 %v486, 16
      %v548 = vrot.slane %v546, 1
      %v549 = vor.u32 %v544, %v548
      %v551 = vshll.u32 %v503, 16
      %v553 = vrot.slane %v551, 1
      %v554 = vsel %vm518, %v549, %v553
      %v556 = vshrl.u32 %v487, 16
      %v558 = vshll.u32 %v487, 16
      %v560 = vrot.slane %v558, 1
      %v561 = vor.u32 %v556, %v560
      %v563 = vshll.u32 %v504, 16
      %v565 = vrot.slane %v563, 1
      %v566 = vsel %vm518, %v561, %v565
      %v568 = vshrl.u32 %v488, 16
      %v570 = vshll.u32 %v488, 16
      %v572 = vrot.slane %v570, 1
      %v573 = vor.u32 %v568, %v572
      %v575 = vshll.u32 %v505, 16
      %v577 = vrot.slane %v575, 1
      %v578 = vsel %vm518, %v573, %v577
      %v580 = vshrl.u32 %v489, 16
      %v582 = vshll.u32 %v489, 16
      %v584 = vrot.slane %v582, 1
      %v585 = vor.u32 %v580, %v584
      %v587 = vshll.u32 %v506, 16
      %v589 = vrot.slane %v587, 1
      %v590 = vsel %vm518, %v585, %v589
      %v592 = vshrl.u32 %v490, 16
      %v594 = vshll.u32 %v490, 16
      %v596 = vrot.slane %v594, 1
      %v597 = vor.u32 %v592, %v596
      %v599 = vshll.u32 %v507, 16
      %v601 = vrot.slane %v599, 1
      %v602 = vsel %vm518, %v597, %v601
      %v604 = vshrl.u32 %v491, 16
      %v606 = vshll.u32 %v491, 16
      %v608 = vrot.slane %v606, 1
      %v609 = vor.u32 %v604, %v608
      %v611 = vshll.u32 %v508, 16
      %v613 = vrot.slane %v611, 1
      %v614 = vsel %vm518, %v609, %v613
      %v616 = vshrl.u32 %v492, 16
      %v618 = vshll.u32 %v492, 16
      %v620 = vrot.slane %v618, 1
      %v621 = vor.u32 %v616, %v620
      %v623 = vshll.u32 %v509, 16
      %v625 = vrot.slane %v623, 1
      %v626 = vsel %vm518, %v621, %v625
      %v628 = vshrl.u32 %v493, 16
      %v630 = vshll.u32 %v493, 16
      %v632 = vrot.slane %v630, 1
      %v633 = vor.u32 %v628, %v632
      %v635 = vshll.u32 %v510, 16
      %v637 = vrot.slane %v635, 1
      %v638 = vsel %vm518, %v633, %v637
      %v640 = vshrl.u32 %v494, 16
      %v642 = vshll.u32 %v494, 16
      %v644 = vrot.slane %v642, 1
      %v645 = vor.u32 %v640, %v644
      %v647 = vshll.u32 %v511, 16
      %v649 = vrot.slane %v647, 1
      %v650 = vsel %vm518, %v645, %v649
      %v652 = vshrl.u32 %v495, 16
      %v654 = vshll.u32 %v495, 16
      %v656 = vrot.slane %v654, 1
      %v657 = vor.u32 %v652, %v656
      %v659 = vshll.u32 %v512, 16
      %v661 = vrot.slane %v659, 1
      %v662 = vsel %vm518, %v657, %v661
      %v664 = vshrl.u32 %v496, 16
      %v666 = vshll.u32 %v496, 16
      %v668 = vrot.slane %v666, 1
      %v669 = vor.u32 %v664, %v668
      %v671 = vshll.u32 %v513, 16
      %v673 = vrot.slane %v671, 1
      %v674 = vsel %vm518, %v669, %v673
      %v676 = vshrl.u32 %v497, 16
      %v678 = vshll.u32 %v497, 16
      %v680 = vrot.slane %v678, 1
      %v681 = vor.u32 %v676, %v680
      %v683 = vshll.u32 %v514, 16
      %v685 = vrot.slane %v683, 1
      %v686 = vsel %vm518, %v681, %v685
      %v688 = vshrl.u32 %v498, 16
      %v690 = vshll.u32 %v498, 16
      %v692 = vrot.slane %v690, 1
      %v693 = vor.u32 %v688, %v692
      %v695 = vshll.u32 %v515, 16
      %v697 = vrot.slane %v695, 1
      %v698 = vsel %vm518, %v693, %v697
      %v700 = vshrl.u32 %v499, 16
      %v702 = vshll.u32 %v499, 16
      %v704 = vrot.slane %v702, 1
      %v705 = vor.u32 %v700, %v704
      %v707 = vshll.u32 %v516, 16
      %v709 = vrot.slane %v707, 1
      %v710 = vsel %vm518, %v705, %v709
      %711 = vrot.lane.b32.xlu0 %v530, 4
      %v712 = vpop.permute.xlu0 %711
      %713 = vrot.lane.b32.xlu0 %v542, 4
      %v714 = vpop.permute.xlu0 %713
      %715 = vrot.lane.b32.xlu0 %v554, 4
      %v716 = vpop.permute.xlu0 %715
      %717 = vrot.lane.b32.xlu0 %v566, 4
      %v718 = vpop.permute.xlu0 %717
      %719 = vrot.lane.b32.xlu0 %v578, 4
      %v720 = vpop.permute.xlu0 %719
      %721 = vrot.lane.b32.xlu0 %v590, 4
      %v722 = vpop.permute.xlu0 %721
      %723 = vrot.lane.b32.xlu0 %v602, 4
      %v724 = vpop.permute.xlu0 %723
      %725 = vrot.lane.b32.xlu0 %v614, 4
      %v726 = vpop.permute.xlu0 %725
      %727 = vrot.lane.b32.xlu0 %v626, 4
      %v728 = vpop.permute.xlu0 %727
      %729 = vrot.lane.b32.xlu0 %v638, 4
      %v730 = vpop.permute.xlu0 %729
      %731 = vrot.lane.b32.xlu0 %v650, 4
      %v732 = vpop.permute.xlu0 %731
      %733 = vrot.lane.b32.xlu0 %v662, 4
      %v734 = vpop.permute.xlu0 %733
      %735 = vrot.lane.b32.xlu0 %v674, 4
      %v736 = vpop.permute.xlu0 %735
      %737 = vrot.lane.b32.xlu0 %v686, 4
      %v738 = vpop.permute.xlu0 %737
      %739 = vrot.lane.b32.xlu0 %v698, 4
      %v740 = vpop.permute.xlu0 %739
      %741 = vrot.lane.b32.xlu0 %v710, 4
      %v742 = vpop.permute.xlu0 %741
      %vm775 = vcmask 1046528
      %v776 = vrot.slane %v484, 1
      %v777 = vrot.slane %v501, 1
      %v778 = vsel %vm775, %v776, %v777
      %v779 = vrot.slane %v485, 1
      %v780 = vrot.slane %v502, 1
      %v781 = vsel %vm775, %v779, %v780
      %v782 = vrot.slane %v486, 1
      %v783 = vrot.slane %v503, 1
      %v784 = vsel %vm775, %v782, %v783
      %v785 = vrot.slane %v487, 1
      %v786 = vrot.slane %v504, 1
      %v787 = vsel %vm775, %v785, %v786
      %v788 = vrot.slane %v488, 1
      %v789 = vrot.slane %v505, 1
      %v790 = vsel %vm775, %v788, %v789
      %v791 = vrot.slane %v489, 1
      %v792 = vrot.slane %v506, 1
      %v793 = vsel %vm775, %v791, %v792
      %v794 = vrot.slane %v490, 1
      %v795 = vrot.slane %v507, 1
      %v796 = vsel %vm775, %v794, %v795
      %v797 = vrot.slane %v491, 1
      %v798 = vrot.slane %v508, 1
      %v799 = vsel %vm775, %v797, %v798
      %v800 = vrot.slane %v492, 1
      %v801 = vrot.slane %v509, 1
      %v802 = vsel %vm775, %v800, %v801
      %v803 = vrot.slane %v493, 1
      %v804 = vrot.slane %v510, 1
      %v805 = vsel %vm775, %v803, %v804
      %v806 = vrot.slane %v494, 1
      %v807 = vrot.slane %v511, 1
      %v808 = vsel %vm775, %v806, %v807
      %v809 = vrot.slane %v495, 1
      %v810 = vrot.slane %v512, 1
      %v811 = vsel %vm775, %v809, %v810
      %v812 = vrot.slane %v496, 1
      %v813 = vrot.slane %v513, 1
      %v814 = vsel %vm775, %v812, %v813
      %v815 = vrot.slane %v497, 1
      %v816 = vrot.slane %v514, 1
      %v817 = vsel %vm775, %v815, %v816
      %v818 = vrot.slane %v498, 1
      %v819 = vrot.slane %v515, 1
      %v820 = vsel %vm775, %v818, %v819
      %v821 = vrot.slane %v499, 1
      %v822 = vrot.slane %v516, 1
      %v823 = vsel %vm775, %v821, %v822
      %824 = vrot.lane.b32.xlu0 %v778, 8
      %v825 = vpop.permute.xlu0 %824
      %826 = vrot.lane.b32.xlu0 %v781, 8
      %v827 = vpop.permute.xlu0 %826
      %828 = vrot.lane.b32.xlu0 %v784, 8
      %v829 = vpop.permute.xlu0 %828
      %830 = vrot.lane.b32.xlu0 %v787, 8
      %v831 = vpop.permute.xlu0 %830
      %832 = vrot.lane.b32.xlu0 %v790, 8
      %v833 = vpop.permute.xlu0 %832
      %834 = vrot.lane.b32.xlu0 %v793, 8
      %v835 = vpop.permute.xlu0 %834
      %836 = vrot.lane.b32.xlu0 %v796, 8
      %v837 = vpop.permute.xlu0 %836
      %838 = vrot.lane.b32.xlu0 %v799, 8
      %v839 = vpop.permute.xlu0 %838
      %840 = vrot.lane.b32.xlu0 %v802, 8
      %v841 = vpop.permute.xlu0 %840
      %842 = vrot.lane.b32.xlu0 %v805, 8
      %v843 = vpop.permute.xlu0 %842
      %844 = vrot.lane.b32.xlu0 %v808, 8
      %v845 = vpop.permute.xlu0 %844
      %846 = vrot.lane.b32.xlu0 %v811, 8
      %v847 = vpop.permute.xlu0 %846
      %848 = vrot.lane.b32.xlu0 %v814, 8
      %v849 = vpop.permute.xlu0 %848
      %850 = vrot.lane.b32.xlu0 %v817, 8
      %v851 = vpop.permute.xlu0 %850
      %852 = vrot.lane.b32.xlu0 %v820, 8
      %v853 = vpop.permute.xlu0 %852
      %854 = vrot.lane.b32.xlu0 %v823, 8
      %v855 = vpop.permute.xlu0 %854
      %857 = vrot.lane.b32.xlu0 %v485, 12
      %v858 = vpop.permute.xlu0 %857
      %859 = vrot.lane.b32.xlu0 %v486, 12
      %v860 = vpop.permute.xlu0 %859
      %861 = vrot.lane.b32.xlu0 %v487, 12
      %v862 = vpop.permute.xlu0 %861
      %863 = vrot.lane.b32.xlu0 %v488, 12
      %v864 = vpop.permute.xlu0 %863
      %865 = vrot.lane.b32.xlu0 %v489, 12
      %v866 = vpop.permute.xlu0 %865
      %867 = vrot.lane.b32.xlu0 %v490, 12
      %v868 = vpop.permute.xlu0 %867
      %869 = vrot.lane.b32.xlu0 %v491, 12
      %v870 = vpop.permute.xlu0 %869
      %871 = vrot.lane.b32.xlu0 %v492, 12
      %v872 = vpop.permute.xlu0 %871
      %873 = vrot.lane.b32.xlu0 %v493, 12
      %v874 = vpop.permute.xlu0 %873
      %875 = vrot.lane.b32.xlu0 %v494, 12
      %v876 = vpop.permute.xlu0 %875
      %877 = vrot.lane.b32.xlu0 %v495, 12
      %v878 = vpop.permute.xlu0 %877
      %879 = vrot.lane.b32.xlu0 %v496, 12
      %v880 = vpop.permute.xlu0 %879
      %881 = vrot.lane.b32.xlu0 %v497, 12
      %v882 = vpop.permute.xlu0 %881
      %883 = vrot.lane.b32.xlu0 %v498, 12
      %v884 = vpop.permute.xlu0 %883
      %885 = vrot.lane.b32.xlu0 %v499, 12
      %v886 = vpop.permute.xlu0 %885
      %887 = vrot.lane.b32.xlu0 %v500, 12
      %v888 = vpop.permute.xlu0 %887
      %v890 = vshrl.u32 %v500, 16
      %v892 = vshll.u32 %v500, 16
      %v894 = vrot.slane %v892, 1
      %v895 = vor.u32 %v890, %v894
      %v897 = vshll.u32 %v517, 16
      %v899 = vrot.slane %v897, 1
      %v900 = vsel %vm518, %v895, %v899
      %901 = vrot.lane.b32.xlu0 %v542, 16
      %v902 = vpop.permute.xlu0 %901
      %903 = vrot.lane.b32.xlu0 %v554, 16
      %v904 = vpop.permute.xlu0 %903
      %905 = vrot.lane.b32.xlu0 %v566, 16
      %v906 = vpop.permute.xlu0 %905
      %907 = vrot.lane.b32.xlu0 %v578, 16
      %v908 = vpop.permute.xlu0 %907
      %909 = vrot.lane.b32.xlu0 %v590, 16
      %v910 = vpop.permute.xlu0 %909
      %911 = vrot.lane.b32.xlu0 %v602, 16
      %v912 = vpop.permute.xlu0 %911
      %913 = vrot.lane.b32.xlu0 %v614, 16
      %v914 = vpop.permute.xlu0 %913
      %915 = vrot.lane.b32.xlu0 %v626, 16
      %v916 = vpop.permute.xlu0 %915
      %917 = vrot.lane.b32.xlu0 %v638, 16
      %v918 = vpop.permute.xlu0 %917
      %919 = vrot.lane.b32.xlu0 %v650, 16
      %v920 = vpop.permute.xlu0 %919
      %921 = vrot.lane.b32.xlu0 %v662, 16
      %v922 = vpop.permute.xlu0 %921
      %923 = vrot.lane.b32.xlu0 %v674, 16
      %v924 = vpop.permute.xlu0 %923
      %925 = vrot.lane.b32.xlu0 %v686, 16
      %v926 = vpop.permute.xlu0 %925
      %927 = vrot.lane.b32.xlu0 %v698, 16
      %v928 = vpop.permute.xlu0 %927
      %929 = vrot.lane.b32.xlu0 %v710, 16
      %v930 = vpop.permute.xlu0 %929
      %931 = vrot.lane.b32.xlu0 %v900, 16
      %v932 = vpop.permute.xlu0 %931
      %v934 = vrot.slane %v500, 1
      %v935 = vrot.slane %v517, 1
      %v936 = vsel %vm775, %v934, %v935
      %937 = vrot.lane.b32.xlu0 %v781, 20
      %v938 = vpop.permute.xlu0 %937
      %939 = vrot.lane.b32.xlu0 %v784, 20
      %v940 = vpop.permute.xlu0 %939
      %941 = vrot.lane.b32.xlu0 %v787, 20
      %v942 = vpop.permute.xlu0 %941
      %943 = vrot.lane.b32.xlu0 %v790, 20
      %v944 = vpop.permute.xlu0 %943
      %945 = vrot.lane.b32.xlu0 %v793, 20
      %v946 = vpop.permute.xlu0 %945
      %947 = vrot.lane.b32.xlu0 %v796, 20
      %v948 = vpop.permute.xlu0 %947
      %949 = vrot.lane.b32.xlu0 %v799, 20
      %v950 = vpop.permute.xlu0 %949
      %951 = vrot.lane.b32.xlu0 %v802, 20
      %v952 = vpop.permute.xlu0 %951
      %953 = vrot.lane.b32.xlu0 %v805, 20
      %v954 = vpop.permute.xlu0 %953
      %955 = vrot.lane.b32.xlu0 %v808, 20
      %v956 = vpop.permute.xlu0 %955
      %957 = vrot.lane.b32.xlu0 %v811, 20
      %v958 = vpop.permute.xlu0 %957
      %959 = vrot.lane.b32.xlu0 %v814, 20
      %v960 = vpop.permute.xlu0 %959
      %961 = vrot.lane.b32.xlu0 %v817, 20
      %v962 = vpop.permute.xlu0 %961
      %963 = vrot.lane.b32.xlu0 %v820, 20
      %v964 = vpop.permute.xlu0 %963
      %965 = vrot.lane.b32.xlu0 %v823, 20
      %v966 = vpop.permute.xlu0 %965
      %967 = vrot.lane.b32.xlu0 %v936, 20
      %v968 = vpop.permute.xlu0 %967
      %969 = vrot.lane.b32.xlu0 %v486, 24
      %v970 = vpop.permute.xlu0 %969
      %971 = vrot.lane.b32.xlu0 %v487, 24
      %v972 = vpop.permute.xlu0 %971
      %973 = vrot.lane.b32.xlu0 %v488, 24
      %v974 = vpop.permute.xlu0 %973
      %975 = vrot.lane.b32.xlu0 %v489, 24
      %v976 = vpop.permute.xlu0 %975
      %977 = vrot.lane.b32.xlu0 %v490, 24
      %v978 = vpop.permute.xlu0 %977
      %979 = vrot.lane.b32.xlu0 %v491, 24
      %v980 = vpop.permute.xlu0 %979
      %981 = vrot.lane.b32.xlu0 %v492, 24
      %v982 = vpop.permute.xlu0 %981
      %983 = vrot.lane.b32.xlu0 %v493, 24
      %v984 = vpop.permute.xlu0 %983
      %985 = vrot.lane.b32.xlu0 %v494, 24
      %v986 = vpop.permute.xlu0 %985
      %987 = vrot.lane.b32.xlu0 %v495, 24
      %v988 = vpop.permute.xlu0 %987
      %989 = vrot.lane.b32.xlu0 %v496, 24
      %v990 = vpop.permute.xlu0 %989
      %991 = vrot.lane.b32.xlu0 %v497, 24
      %v992 = vpop.permute.xlu0 %991
      %993 = vrot.lane.b32.xlu0 %v498, 24
      %v994 = vpop.permute.xlu0 %993
      %995 = vrot.lane.b32.xlu0 %v499, 24
      %v996 = vpop.permute.xlu0 %995
      %997 = vrot.lane.b32.xlu0 %v500, 24
      %v998 = vpop.permute.xlu0 %997
      %999 = vrot.lane.b32.xlu0 %v484, 24
      %v1000 = vpop.permute.xlu0 %999
      %1001 = vrot.lane.b32.xlu0 %v554, 28
      %v1002 = vpop.permute.xlu0 %1001
      %1003 = vrot.lane.b32.xlu0 %v566, 28
      %v1004 = vpop.permute.xlu0 %1003
      %1005 = vrot.lane.b32.xlu0 %v578, 28
      %v1006 = vpop.permute.xlu0 %1005
      %1007 = vrot.lane.b32.xlu0 %v590, 28
      %v1008 = vpop.permute.xlu0 %1007
      %1009 = vrot.lane.b32.xlu0 %v602, 28
      %v1010 = vpop.permute.xlu0 %1009
      %1011 = vrot.lane.b32.xlu0 %v614, 28
      %v1012 = vpop.permute.xlu0 %1011
      %1013 = vrot.lane.b32.xlu0 %v626, 28
      %v1014 = vpop.permute.xlu0 %1013
      %1015 = vrot.lane.b32.xlu0 %v638, 28
      %v1016 = vpop.permute.xlu0 %1015
      %1017 = vrot.lane.b32.xlu0 %v650, 28
      %v1018 = vpop.permute.xlu0 %1017
      %1019 = vrot.lane.b32.xlu0 %v662, 28
      %v1020 = vpop.permute.xlu0 %1019
      %1021 = vrot.lane.b32.xlu0 %v674, 28
      %v1022 = vpop.permute.xlu0 %1021
      %1023 = vrot.lane.b32.xlu0 %v686, 28
      %v1024 = vpop.permute.xlu0 %1023
      %1025 = vrot.lane.b32.xlu0 %v698, 28
      %v1026 = vpop.permute.xlu0 %1025
      %1027 = vrot.lane.b32.xlu0 %v710, 28
      %v1028 = vpop.permute.xlu0 %1027
      %1029 = vrot.lane.b32.xlu0 %v900, 28
      %v1030 = vpop.permute.xlu0 %1029
      %1031 = vrot.lane.b32.xlu0 %v530, 28
      %v1032 = vpop.permute.xlu0 %1031
      %1033 = vrot.lane.b32.xlu0 %v784, 32
      %v1034 = vpop.permute.xlu0 %1033
      %1035 = vrot.lane.b32.xlu0 %v787, 32
      %v1036 = vpop.permute.xlu0 %1035
      %1037 = vrot.lane.b32.xlu0 %v790, 32
      %v1038 = vpop.permute.xlu0 %1037
      %1039 = vrot.lane.b32.xlu0 %v793, 32
      %v1040 = vpop.permute.xlu0 %1039
      %1041 = vrot.lane.b32.xlu0 %v796, 32
      %v1042 = vpop.permute.xlu0 %1041
      %1043 = vrot.lane.b32.xlu0 %v799, 32
      %v1044 = vpop.permute.xlu0 %1043
      %1045 = vrot.lane.b32.xlu0 %v802, 32
      %v1046 = vpop.permute.xlu0 %1045
      %1047 = vrot.lane.b32.xlu0 %v805, 32
      %v1048 = vpop.permute.xlu0 %1047
      %1049 = vrot.lane.b32.xlu0 %v808, 32
      %v1050 = vpop.permute.xlu0 %1049
      %1051 = vrot.lane.b32.xlu0 %v811, 32
      %v1052 = vpop.permute.xlu0 %1051
      %1053 = vrot.lane.b32.xlu0 %v814, 32
      %v1054 = vpop.permute.xlu0 %1053
      %1055 = vrot.lane.b32.xlu0 %v817, 32
      %v1056 = vpop.permute.xlu0 %1055
      %1057 = vrot.lane.b32.xlu0 %v820, 32
      %v1058 = vpop.permute.xlu0 %1057
      %1059 = vrot.lane.b32.xlu0 %v823, 32
      %v1060 = vpop.permute.xlu0 %1059
      %1061 = vrot.lane.b32.xlu0 %v936, 32
      %v1062 = vpop.permute.xlu0 %1061
      %1063 = vrot.lane.b32.xlu0 %v778, 32
      %v1064 = vpop.permute.xlu0 %1063
      %vm1065 = vcmask 31744
      %v1067 = vsel %vm1065, %v484, %v712
      %v1069 = vsel %vm1065, %v485, %v714
      %v1071 = vsel %vm1065, %v486, %v716
      %v1073 = vsel %vm1065, %v487, %v718
      %v1075 = vsel %vm1065, %v488, %v720
      %v1077 = vsel %vm1065, %v489, %v722
      %v1079 = vsel %vm1065, %v490, %v724
      %v1081 = vsel %vm1065, %v491, %v726
      %v1083 = vsel %vm1065, %v492, %v728
      %v1085 = vsel %vm1065, %v493, %v730
      %v1087 = vsel %vm1065, %v494, %v732
      %v1089 = vsel %vm1065, %v495, %v734
      %v1091 = vsel %vm1065, %v496, %v736
      %v1093 = vsel %vm1065, %v497, %v738
      %v1095 = vsel %vm1065, %v498, %v740
      %v1097 = vsel %vm1065, %v499, %v742
      %vm1098 = vcmask 64512
      %v1100 = vsel %vm1098, %v1067, %v825
      %v1102 = vsel %vm1098, %v1069, %v827
      %v1104 = vsel %vm1098, %v1071, %v829
      %v1106 = vsel %vm1098, %v1073, %v831
      %v1108 = vsel %vm1098, %v1075, %v833
      %v1110 = vsel %vm1098, %v1077, %v835
      %v1112 = vsel %vm1098, %v1079, %v837
      %v1114 = vsel %vm1098, %v1081, %v839
      %v1116 = vsel %vm1098, %v1083, %v841
      %v1118 = vsel %vm1098, %v1085, %v843
      %v1120 = vsel %vm1098, %v1087, %v845
      %v1122 = vsel %vm1098, %v1089, %v847
      %v1124 = vsel %vm1098, %v1091, %v849
      %v1126 = vsel %vm1098, %v1093, %v851
      %v1128 = vsel %vm1098, %v1095, %v853
      %v1130 = vsel %vm1098, %v1097, %v855
      %vm1131 = vcmask 97280
      %v1133 = vsel %vm1131, %v1100, %v858
      %v1135 = vsel %vm1131, %v1102, %v860
      %v1137 = vsel %vm1131, %v1104, %v862
      %v1139 = vsel %vm1131, %v1106, %v864
      %v1141 = vsel %vm1131, %v1108, %v866
      %v1143 = vsel %vm1131, %v1110, %v868
      %v1145 = vsel %vm1131, %v1112, %v870
      %v1147 = vsel %vm1131, %v1114, %v872
      %v1149 = vsel %vm1131, %v1116, %v874
      %v1151 = vsel %vm1131, %v1118, %v876
      %v1153 = vsel %vm1131, %v1120, %v878
      %v1155 = vsel %vm1131, %v1122, %v880
      %v1157 = vsel %vm1131, %v1124, %v882
      %v1159 = vsel %vm1131, %v1126, %v884
      %v1161 = vsel %vm1131, %v1128, %v886
      %v1163 = vsel %vm1131, %v1130, %v888
      %vm1164 = vcmask 130048
      %v1166 = vsel %vm1164, %v1133, %v902
      %v1168 = vsel %vm1164, %v1135, %v904
      %v1170 = vsel %vm1164, %v1137, %v906
      %v1172 = vsel %vm1164, %v1139, %v908
      %v1174 = vsel %vm1164, %v1141, %v910
      %v1176 = vsel %vm1164, %v1143, %v912
      %v1178 = vsel %vm1164, %v1145, %v914
      %v1180 = vsel %vm1164, %v1147, %v916
      %v1182 = vsel %vm1164, %v1149, %v918
      %v1184 = vsel %vm1164, %v1151, %v920
      %v1186 = vsel %vm1164, %v1153, %v922
      %v1188 = vsel %vm1164, %v1155, %v924
      %v1190 = vsel %vm1164, %v1157, %v926
      %v1192 = vsel %vm1164, %v1159, %v928
      %v1194 = vsel %vm1164, %v1161, %v930
      %v1196 = vsel %vm1164, %v1163, %v932
      %vm1197 = vcmask 162816
      %v1199 = vsel %vm1197, %v1166, %v938
      %v1201 = vsel %vm1197, %v1168, %v940
      %v1203 = vsel %vm1197, %v1170, %v942
      %v1205 = vsel %vm1197, %v1172, %v944
      %v1207 = vsel %vm1197, %v1174, %v946
      %v1209 = vsel %vm1197, %v1176, %v948
      %v1211 = vsel %vm1197, %v1178, %v950
      %v1213 = vsel %vm1197, %v1180, %v952
      %v1215 = vsel %vm1197, %v1182, %v954
      %v1217 = vsel %vm1197, %v1184, %v956
      %v1219 = vsel %vm1197, %v1186, %v958
      %v1221 = vsel %vm1197, %v1188, %v960
      %v1223 = vsel %vm1197, %v1190, %v962
      %v1225 = vsel %vm1197, %v1192, %v964
      %v1227 = vsel %vm1197, %v1194, %v966
      %v1229 = vsel %vm1197, %v1196, %v968
      %vm1230 = vcmask 195584
      %v1232 = vsel %vm1230, %v1199, %v970
      %v1234 = vsel %vm1230, %v1201, %v972
      %v1236 = vsel %vm1230, %v1203, %v974
      %v1238 = vsel %vm1230, %v1205, %v976
      %v1240 = vsel %vm1230, %v1207, %v978
      %v1242 = vsel %vm1230, %v1209, %v980
      %v1244 = vsel %vm1230, %v1211, %v982
      %v1246 = vsel %vm1230, %v1213, %v984
      %v1248 = vsel %vm1230, %v1215, %v986
      %v1250 = vsel %vm1230, %v1217, %v988
      %v1252 = vsel %vm1230, %v1219, %v990
      %v1254 = vsel %vm1230, %v1221, %v992
      %v1256 = vsel %vm1230, %v1223, %v994
      %v1258 = vsel %vm1230, %v1225, %v996
      %v1260 = vsel %vm1230, %v1227, %v998
      %v1262 = vsel %vm1230, %v1229, %v1000
      %vm1263 = vcmask 228352
      %v1265 = vsel %vm1263, %v1232, %v1002
      %v1267 = vsel %vm1263, %v1234, %v1004
      %v1269 = vsel %vm1263, %v1236, %v1006
      %v1271 = vsel %vm1263, %v1238, %v1008
      %v1273 = vsel %vm1263, %v1240, %v1010
      %v1275 = vsel %vm1263, %v1242, %v1012
      %v1277 = vsel %vm1263, %v1244, %v1014
      %v1279 = vsel %vm1263, %v1246, %v1016
      %v1281 = vsel %vm1263, %v1248, %v1018
      %v1283 = vsel %vm1263, %v1250, %v1020
      %v1285 = vsel %vm1263, %v1252, %v1022
      %v1287 = vsel %vm1263, %v1254, %v1024
      %v1289 = vsel %vm1263, %v1256, %v1026
      %v1291 = vsel %vm1263, %v1258, %v1028
      %v1293 = vsel %vm1263, %v1260, %v1030
      %v1295 = vsel %vm1263, %v1262, %v1032
      %vm1296 = vcmask 261120
      %v1298 = vsel %vm1296, %v1265, %v1034
      %v1300 = vsel %vm1296, %v1267, %v1036
      %v1302 = vsel %vm1296, %v1269, %v1038
      %v1304 = vsel %vm1296, %v1271, %v1040
      %v1306 = vsel %vm1296, %v1273, %v1042
      %v1308 = vsel %vm1296, %v1275, %v1044
      %v1310 = vsel %vm1296, %v1277, %v1046
      %v1312 = vsel %vm1296, %v1279, %v1048
      %v1314 = vsel %vm1296, %v1281, %v1050
      %v1316 = vsel %vm1296, %v1283, %v1052
      %v1318 = vsel %vm1296, %v1285, %v1054
      %v1320 = vsel %vm1296, %v1287, %v1056
      %v1322 = vsel %vm1296, %v1289, %v1058
      %v1324 = vsel %vm1296, %v1291, %v1060
      %v1326 = vsel %vm1296, %v1293, %v1062
      %v1328 = vsel %vm1296, %v1295, %v1064
      %v1329 = vld [vmem:[%s1] sm:$0xf]
      %v1330 = vld [vmem:[%s1 + $0x4] sm:$0xf]
      %v1331 = vld [vmem:[%s1 + $0x8] sm:$0xf]
      %v1332 = vld [vmem:[%s1 + $0xc] sm:$0xf]
      %v1333 = vld [vmem:[%s1 + $0x10] sm:$0x3]
      %v1339 = vunpack.c.l.b16 %v1329
      %v1340 = vunpack.c.l.b16 %v1330
      %v1341 = vunpack.c.l.b16 %v1331
      %v1342 = vunpack.c.l.b16 %v1332
      %v1343 = vunpack.c.l.b16 %v1333
      %v1344 = vpack.c.b16 %v1340, %v1339
      %v1345 = vpack.c.b16 %v1342, %v1341
      %v1346 = vpack.c.b16 %v1343, %v1343
      %vm1349 = vcmask 293888
      %v1350 = vsel %vm1349, %v1298, 0
      %v1352 = vsel %vm1349, %v1300, 0
      %v1354 = vsel %vm1349, %v1302, 0
      %v1356 = vsel %vm1349, %v1304, 0
      %v1358 = vsel %vm1349, %v1306, 0
      %v1360 = vsel %vm1349, %v1308, 0
      %v1362 = vsel %vm1349, %v1310, 0
      %v1364 = vsel %vm1349, %v1312, 0
      %v1366 = vsel %vm1349, %v1314, 0
      %v1368 = vsel %vm1349, %v1316, 0
      %v1370 = vsel %vm1349, %v1318, 0
      %v1372 = vsel %vm1349, %v1320, 0
      %v1374 = vsel %vm1349, %v1322, 0
      %v1376 = vsel %vm1349, %v1324, 0
      %v1378 = vsel %vm1349, %v1326, 0
      %v1380 = vsel %vm1349, %v1328, 0
      %vm1382 = vcmask 1041408
      %v1384 = vsel %vm1382, %v1346, 0
      %1386 = vmatprep.subr.bf16.mxu0 0
      %1387 = vmatpush1.bf16.msra.mxu0 0
      %1388 = vmatprep.subr.bf16.mxu0 0
      %1389 = vmatpush1.bf16.msra.mxu0 0
      %1390 = vmatprep.subr.bf16.mxu0 0
      %1391 = vmatpush1.bf16.msra.mxu0 0
      %1392 = vmatprep.subr.bf16.mxu0 0
      %1393 = vmatpush1.bf16.msra.mxu0 0
      %1394 = vmatprep.subr.bf16.mxu0 0
      %1395 = vmatpush1.bf16.msra.mxu0 0
      %1396 = vmatprep.subr.bf16.mxu0 0
      %1397 = vmatpush1.bf16.msra.mxu0 %v1384
      %1398 = vmatprep.subr.bf16.mxu0 0
      %1399 = vmatpush1.bf16.msra.mxu0 %v1345
      %1400 = vmatprep.subr.bf16.mxu0 0
      %1401 = vmatpush1.bf16.msra.mxu0 %v1344
      %1402 = vmatprep.subr.bf16.mxu0 0
      %1403 = vmatpush2.bf16.msra.mxu0 0
      %1404 = vmatprep.subr.bf16.mxu0 0
      %1405 = vmatpush2.bf16.msra.mxu0 0
      %1406 = vmatprep.subr.bf16.mxu0 0
      %1407 = vmatpush2.bf16.msra.mxu0 0
      %1408 = vmatprep.subr.bf16.mxu0 0
      %1409 = vmatpush2.bf16.msra.mxu0 0
      %1410 = vmatprep.subr.bf16.mxu0 0
      %1411 = vmatpush2.bf16.msra.mxu0 0
      %1412 = vmatprep.subr.bf16.mxu0 0
      %1413 = vmatpush2.bf16.msra.mxu0 0
      %1414 = vmatprep.subr.bf16.mxu0 0
      %1415 = vmatpush2.bf16.msra.mxu0 0
      %1416 = vmatprep.subr.bf16.mxu0 0
      %1417 = vmatpush2.bf16.msra.mxu0 0
      %1418 = vmatprep.mubr.bf16.mxu0 0
      %1419 = vmatmul.mubr.bf16.gmra.mxu0 %v1350
      %v1420 = vpop.f32.mrf.mxu0
      %v1421 = vadd.f32 0.0, %v1420
      %v1422 = vpop.f32.mrf.mxu0
      %v1423 = vpop.f32.mrf.mxu0
      %v1424 = vadd.f32 0.0, %v1423
      %v1425 = vpop.f32.mrf.mxu0
      %1426 = vmatprep.mubr.bf16.mxu0 0
      %1427 = vmatmul.mubr.bf16.gmra.mxu0 %v1352
      %v1428 = vpop.f32.mrf.mxu0
      %v1429 = vadd.f32 0.0, %v1428
      %v1430 = vpop.f32.mrf.mxu0
      %v1431 = vpop.f32.mrf.mxu0
      %v1432 = vadd.f32 0.0, %v1431
      %v1433 = vpop.f32.mrf.mxu0
      %1434 = vmatprep.mubr.bf16.mxu0 0
      %1435 = vmatmul.mubr.bf16.gmra.mxu0 %v1354
      %v1436 = vpop.f32.mrf.mxu0
      %v1437 = vadd.f32 0.0, %v1436
      %v1438 = vpop.f32.mrf.mxu0
      %v1439 = vpop.f32.mrf.mxu0
      %v1440 = vadd.f32 0.0, %v1439
      %v1441 = vpop.f32.mrf.mxu0
      %1442 = vmatprep.mubr.bf16.mxu0 0
      %1443 = vmatmul.mubr.bf16.gmra.mxu0 %v1356
      %v1444 = vpop.f32.mrf.mxu0
      %v1445 = vadd.f32 0.0, %v1444
      %v1446 = vpop.f32.mrf.mxu0
      %v1447 = vpop.f32.mrf.mxu0
      %v1448 = vadd.f32 0.0, %v1447
      %v1449 = vpop.f32.mrf.mxu0
      %1450 = vmatprep.mubr.bf16.mxu0 0
      %1451 = vmatmul.mubr.bf16.gmra.mxu0 %v1358
      %v1452 = vpop.f32.mrf.mxu0
      %v1453 = vadd.f32 0.0, %v1452
      %v1454 = vpop.f32.mrf.mxu0
      %v1455 = vpop.f32.mrf.mxu0
      %v1456 = vadd.f32 0.0, %v1455
      %v1457 = vpop.f32.mrf.mxu0
      %1458 = vmatprep.mubr.bf16.mxu0 0
      %1459 = vmatmul.mubr.bf16.gmra.mxu0 %v1360
      %v1460 = vpop.f32.mrf.mxu0
      %v1461 = vadd.f32 0.0, %v1460
      %v1462 = vpop.f32.mrf.mxu0
      %v1463 = vpop.f32.mrf.mxu0
      %v1464 = vadd.f32 0.0, %v1463
      %v1465 = vpop.f32.mrf.mxu0
      %1466 = vmatprep.mubr.bf16.mxu0 0
      %1467 = vmatmul.mubr.bf16.gmra.mxu0 %v1362
      %v1468 = vpop.f32.mrf.mxu0
      %v1469 = vadd.f32 0.0, %v1468
      %v1470 = vpop.f32.mrf.mxu0
      %v1471 = vpop.f32.mrf.mxu0
      %v1472 = vadd.f32 0.0, %v1471
      %v1473 = vpop.f32.mrf.mxu0
      %1474 = vmatprep.mubr.bf16.mxu0 0
      %1475 = vmatmul.mubr.bf16.gmra.mxu0 %v1364
      %v1476 = vpop.f32.mrf.mxu0
      %v1477 = vadd.f32 0.0, %v1476
      %v1478 = vpop.f32.mrf.mxu0
      %v1479 = vpop.f32.mrf.mxu0
      %v1480 = vadd.f32 0.0, %v1479
      %v1481 = vpop.f32.mrf.mxu0
      %1482 = vmatprep.mubr.bf16.mxu0 0
      %1483 = vmatmul.mubr.bf16.gmra.mxu0 %v1366
      %v1484 = vpop.f32.mrf.mxu0
      %v1485 = vadd.f32 0.0, %v1484
      %v1486 = vpop.f32.mrf.mxu0
      %v1487 = vpop.f32.mrf.mxu0
      %v1488 = vadd.f32 0.0, %v1487
      %v1489 = vpop.f32.mrf.mxu0
      %1490 = vmatprep.mubr.bf16.mxu0 0
      %1491 = vmatmul.mubr.bf16.gmra.mxu0 %v1368
      %v1492 = vpop.f32.mrf.mxu0
      %v1493 = vadd.f32 0.0, %v1492
      %v1494 = vpop.f32.mrf.mxu0
      %v1495 = vpop.f32.mrf.mxu0
      %v1496 = vadd.f32 0.0, %v1495
      %v1497 = vpop.f32.mrf.mxu0
      %1498 = vmatprep.mubr.bf16.mxu0 0
      %1499 = vmatmul.mubr.bf16.gmra.mxu0 %v1370
      %v1500 = vpop.f32.mrf.mxu0
      %v1501 = vadd.f32 0.0, %v1500
      %v1502 = vpop.f32.mrf.mxu0
      %v1503 = vpop.f32.mrf.mxu0
      %v1504 = vadd.f32 0.0, %v1503
      %v1505 = vpop.f32.mrf.mxu0
      %1506 = vmatprep.mubr.bf16.mxu0 0
      %1507 = vmatmul.mubr.bf16.gmra.mxu0 %v1372
      %v1508 = vpop.f32.mrf.mxu0
      %v1509 = vadd.f32 0.0, %v1508
      %v1510 = vpop.f32.mrf.mxu0
      %v1511 = vpop.f32.mrf.mxu0
      %v1512 = vadd.f32 0.0, %v1511
      %v1513 = vpop.f32.mrf.mxu0
      %1514 = vmatprep.mubr.bf16.mxu0 0
      %1515 = vmatmul.mubr.bf16.gmra.mxu0 %v1374
      %v1516 = vpop.f32.mrf.mxu0
      %v1517 = vadd.f32 0.0, %v1516
      %v1518 = vpop.f32.mrf.mxu0
      %v1519 = vpop.f32.mrf.mxu0
      %v1520 = vadd.f32 0.0, %v1519
      %v1521 = vpop.f32.mrf.mxu0
      %1522 = vmatprep.mubr.bf16.mxu0 0
      %1523 = vmatmul.mubr.bf16.gmra.mxu0 %v1376
      %v1524 = vpop.f32.mrf.mxu0
      %v1525 = vadd.f32 0.0, %v1524
      %v1526 = vpop.f32.mrf.mxu0
      %v1527 = vpop.f32.mrf.mxu0
      %v1528 = vadd.f32 0.0, %v1527
      %v1529 = vpop.f32.mrf.mxu0
      %1530 = vmatprep.mubr.bf16.mxu0 0
      %1531 = vmatmul.mubr.bf16.gmra.mxu0 %v1378
      %v1532 = vpop.f32.mrf.mxu0
      %v1533 = vadd.f32 0.0, %v1532
      %v1534 = vpop.f32.mrf.mxu0
      %v1535 = vpop.f32.mrf.mxu0
      %v1536 = vadd.f32 0.0, %v1535
      %v1537 = vpop.f32.mrf.mxu0
      %1538 = vmatprep.mubr.bf16.mxu0 0
      %1539 = vmatmul.mubr.bf16.gmra.mxu0 %v1380
      %v1540 = vpop.f32.mrf.mxu0
      %v1541 = vadd.f32 0.0, %v1540
      %v1542 = vpop.f32.mrf.mxu0
      %v1543 = vpop.f32.mrf.mxu0
      %v1544 = vadd.f32 0.0, %v1543
      %v1545 = vpop.f32.mrf.mxu0
      %1546 = vdwg.mxu0
      %v1547 = vld [vmem:[%s2] sm:$0x1]
      %v1549 = vlaneseq
      %v1550 = vshrl.u32 %v1549, 7
      %v1551 = vsub.s32 0, %v1550
      %v1552 = vrot.slane %v1547, %v1551
      %v1554 = vmul.f32 %v1421, %v1552
      %v1555 = vmul.f32 %v1424, %v1552
      %v1556 = vmul.f32 %v1429, %v1552
      %v1557 = vmul.f32 %v1432, %v1552
      %v1558 = vmul.f32 %v1437, %v1552
      %v1559 = vmul.f32 %v1440, %v1552
      %v1560 = vmul.f32 %v1445, %v1552
      %v1561 = vmul.f32 %v1448, %v1552
      %v1562 = vmul.f32 %v1453, %v1552
      %v1563 = vmul.f32 %v1456, %v1552
      %v1564 = vmul.f32 %v1461, %v1552
      %v1565 = vmul.f32 %v1464, %v1552
      %v1566 = vmul.f32 %v1469, %v1552
      %v1567 = vmul.f32 %v1472, %v1552
      %v1568 = vmul.f32 %v1477, %v1552
      %v1569 = vmul.f32 %v1480, %v1552
      %v1570 = vmul.f32 %v1485, %v1552
      %v1571 = vmul.f32 %v1488, %v1552
      %v1572 = vmul.f32 %v1493, %v1552
      %v1573 = vmul.f32 %v1496, %v1552
      %v1574 = vmul.f32 %v1501, %v1552
      %v1575 = vmul.f32 %v1504, %v1552
      %v1576 = vmul.f32 %v1509, %v1552
      %v1577 = vmul.f32 %v1512, %v1552
      %v1578 = vmul.f32 %v1517, %v1552
      %v1579 = vmul.f32 %v1520, %v1552
      %v1580 = vmul.f32 %v1525, %v1552
      %v1581 = vmul.f32 %v1528, %v1552
      %v1582 = vmul.f32 %v1533, %v1552
      %v1583 = vmul.f32 %v1536, %v1552
      %v1584 = vmul.f32 %v1541, %v1552
      %v1585 = vmul.f32 %v1544, %v1552
      %v1586 = vld [vmem:[%s3] sm:$0x1]
      %v1588 = vlaneseq
      %v1589 = vshrl.u32 %v1588, 7
      %v1590 = vsub.s32 0, %v1589
      %v1591 = vrot.slane %v1586, %v1590
      %v1593 = vadd.f32 %v1554, %v1591
      %v1594 = vadd.f32 %v1555, %v1591
      %v1595 = vadd.f32 %v1556, %v1591
      %v1596 = vadd.f32 %v1557, %v1591
      %v1597 = vadd.f32 %v1558, %v1591
      %v1598 = vadd.f32 %v1559, %v1591
      %v1599 = vadd.f32 %v1560, %v1591
      %v1600 = vadd.f32 %v1561, %v1591
      %v1601 = vadd.f32 %v1562, %v1591
      %v1602 = vadd.f32 %v1563, %v1591
      %v1603 = vadd.f32 %v1564, %v1591
      %v1604 = vadd.f32 %v1565, %v1591
      %v1605 = vadd.f32 %v1566, %v1591
      %v1606 = vadd.f32 %v1567, %v1591
      %v1607 = vadd.f32 %v1568, %v1591
      %v1608 = vadd.f32 %v1569, %v1591
      %v1609 = vadd.f32 %v1570, %v1591
      %v1610 = vadd.f32 %v1571, %v1591
      %v1611 = vadd.f32 %v1572, %v1591
      %v1612 = vadd.f32 %v1573, %v1591
      %v1613 = vadd.f32 %v1574, %v1591
      %v1614 = vadd.f32 %v1575, %v1591
      %v1615 = vadd.f32 %v1576, %v1591
      %v1616 = vadd.f32 %v1577, %v1591
      %v1617 = vadd.f32 %v1578, %v1591
      %v1618 = vadd.f32 %v1579, %v1591
      %v1619 = vadd.f32 %v1580, %v1591
      %v1620 = vadd.f32 %v1581, %v1591
      %v1621 = vadd.f32 %v1582, %v1591
      %v1622 = vadd.f32 %v1583, %v1591
      %v1623 = vadd.f32 %v1584, %v1591
      %v1624 = vadd.f32 %v1585, %v1591
      %v1625 = vmax.f32 %v1593, 0.0
      %v1626 = vmax.f32 %v1594, 0.0
      %v1627 = vmax.f32 %v1595, 0.0
      %v1628 = vmax.f32 %v1596, 0.0
      %v1629 = vmax.f32 %v1597, 0.0
      %v1630 = vmax.f32 %v1598, 0.0
      %v1631 = vmax.f32 %v1599, 0.0
      %v1632 = vmax.f32 %v1600, 0.0
      %v1633 = vmax.f32 %v1601, 0.0
      %v1634 = vmax.f32 %v1602, 0.0
      %v1635 = vmax.f32 %v1603, 0.0
      %v1636 = vmax.f32 %v1604, 0.0
      %v1637 = vmax.f32 %v1605, 0.0
      %v1638 = vmax.f32 %v1606, 0.0
      %v1639 = vmax.f32 %v1607, 0.0
      %v1640 = vmax.f32 %v1608, 0.0
      %v1641 = vmax.f32 %v1609, 0.0
      %v1642 = vmax.f32 %v1610, 0.0
      %v1643 = vmax.f32 %v1611, 0.0
      %v1644 = vmax.f32 %v1612, 0.0
      %v1645 = vmax.f32 %v1613, 0.0
      %v1646 = vmax.f32 %v1614, 0.0
      %v1647 = vmax.f32 %v1615, 0.0
      %v1648 = vmax.f32 %v1616, 0.0
      %v1649 = vmax.f32 %v1617, 0.0
      %v1650 = vmax.f32 %v1618, 0.0
      %v1651 = vmax.f32 %v1619, 0.0
      %v1652 = vmax.f32 %v1620, 0.0
      %v1653 = vmax.f32 %v1621, 0.0
      %v1654 = vmax.f32 %v1622, 0.0
      %v1655 = vmax.f32 %v1623, 0.0
      %v1656 = vmax.f32 %v1624, 0.0
      %v1657 = vpack.c.bf16 %v1626, %v1625
      %v1658 = vpack.c.bf16 %v1628, %v1627
      %v1659 = vpack.c.bf16 %v1630, %v1629
      %v1660 = vpack.c.bf16 %v1632, %v1631
      %v1661 = vpack.c.bf16 %v1634, %v1633
      %v1662 = vpack.c.bf16 %v1636, %v1635
      %v1663 = vpack.c.bf16 %v1638, %v1637
      %v1664 = vpack.c.bf16 %v1640, %v1639
      %v1665 = vpack.c.bf16 %v1642, %v1641
      %v1666 = vpack.c.bf16 %v1644, %v1643
      %v1667 = vpack.c.bf16 %v1646, %v1645
      %v1668 = vpack.c.bf16 %v1648, %v1647
      %v1669 = vpack.c.bf16 %v1650, %v1649
      %v1670 = vpack.c.bf16 %v1652, %v1651
      %v1671 = vpack.c.bf16 %v1654, %v1653
      %v1672 = vpack.c.bf16 %v1656, %v1655
      %v1674 = vshrl.u32 %v1657, 16
      %v1676 = vrot.slane %v1674, 7
      %v1677 = vshll.u32 %v1657, 16
      %v1679 = vor.u32 %v1676, %v1677
      %v1681 = vshrl.u32 %v1658, 16
      %v1683 = vrot.slane %v1681, 7
      %v1684 = vshll.u32 %v1658, 16
      %v1686 = vor.u32 %v1683, %v1684
      %v1688 = vshrl.u32 %v1659, 16
      %v1690 = vrot.slane %v1688, 7
      %v1691 = vshll.u32 %v1659, 16
      %v1693 = vor.u32 %v1690, %v1691
      %v1695 = vshrl.u32 %v1660, 16
      %v1697 = vrot.slane %v1695, 7
      %v1698 = vshll.u32 %v1660, 16
      %v1700 = vor.u32 %v1697, %v1698
      %v1702 = vshrl.u32 %v1661, 16
      %v1704 = vrot.slane %v1702, 7
      %v1705 = vshll.u32 %v1661, 16
      %v1707 = vor.u32 %v1704, %v1705
      %v1709 = vshrl.u32 %v1662, 16
      %v1711 = vrot.slane %v1709, 7
      %v1712 = vshll.u32 %v1662, 16
      %v1714 = vor.u32 %v1711, %v1712
      %v1716 = vshrl.u32 %v1663, 16
      %v1718 = vrot.slane %v1716, 7
      %v1719 = vshll.u32 %v1663, 16
      %v1721 = vor.u32 %v1718, %v1719
      %v1723 = vshrl.u32 %v1664, 16
      %v1725 = vrot.slane %v1723, 7
      %v1726 = vshll.u32 %v1664, 16
      %v1728 = vor.u32 %v1725, %v1726
      %v1730 = vshrl.u32 %v1665, 16
      %v1732 = vrot.slane %v1730, 7
      %v1733 = vshll.u32 %v1665, 16
      %v1735 = vor.u32 %v1732, %v1733
      %v1737 = vshrl.u32 %v1666, 16
      %v1739 = vrot.slane %v1737, 7
      %v1740 = vshll.u32 %v1666, 16
      %v1742 = vor.u32 %v1739, %v1740
      %v1744 = vshrl.u32 %v1667, 16
      %v1746 = vrot.slane %v1744, 7
      %v1747 = vshll.u32 %v1667, 16
      %v1749 = vor.u32 %v1746, %v1747
      %v1751 = vshrl.u32 %v1668, 16
      %v1753 = vrot.slane %v1751, 7
      %v1754 = vshll.u32 %v1668, 16
      %v1756 = vor.u32 %v1753, %v1754
      %v1758 = vshrl.u32 %v1669, 16
      %v1760 = vrot.slane %v1758, 7
      %v1761 = vshll.u32 %v1669, 16
      %v1763 = vor.u32 %v1760, %v1761
      %v1765 = vshrl.u32 %v1670, 16
      %v1767 = vrot.slane %v1765, 7
      %v1768 = vshll.u32 %v1670, 16
      %v1770 = vor.u32 %v1767, %v1768
      %v1772 = vshrl.u32 %v1671, 16
      %v1774 = vrot.slane %v1772, 7
      %v1775 = vshll.u32 %v1671, 16
      %v1777 = vor.u32 %v1774, %v1775
      %v1779 = vshrl.u32 %v1672, 16
      %v1781 = vrot.slane %v1779, 7
      %v1782 = vshll.u32 %v1672, 16
      %v1784 = vor.u32 %v1781, %v1782
      %v1817 = vsel %vm483, 0, %v1679
      %v1818 = vsel %vm483, 0, %v1686
      %v1819 = vsel %vm483, 0, %v1693
      %v1820 = vsel %vm483, 0, %v1700
      %v1821 = vsel %vm483, 0, %v1707
      %v1822 = vsel %vm483, 0, %v1714
      %v1823 = vsel %vm483, 0, %v1721
      %v1824 = vsel %vm483, 0, %v1728
      %v1825 = vsel %vm483, 0, %v1735
      %v1826 = vsel %vm483, 0, %v1742
      %v1827 = vsel %vm483, 0, %v1749
      %v1828 = vsel %vm483, 0, %v1756
      %v1829 = vsel %vm483, 0, %v1763
      %v1830 = vsel %vm483, 0, %v1770
      %v1831 = vsel %vm483, 0, %v1777
      %v1832 = vsel %vm483, 0, %v1784
      %v1833 = vsel %vm483, %v1676, 0
      %v1834 = vsel %vm483, %v1683, 0
      %v1835 = vsel %vm483, %v1690, 0
      %v1836 = vsel %vm483, %v1697, 0
      %v1837 = vsel %vm483, %v1704, 0
      %v1838 = vsel %vm483, %v1711, 0
      %v1839 = vsel %vm483, %v1718, 0
      %v1840 = vsel %vm483, %v1725, 0
      %v1841 = vsel %vm483, %v1732, 0
      %v1842 = vsel %vm483, %v1739, 0
      %v1843 = vsel %vm483, %v1746, 0
      %v1844 = vsel %vm483, %v1753, 0
      %v1845 = vsel %vm483, %v1760, 0
      %v1846 = vsel %vm483, %v1767, 0
      %v1847 = vsel %vm483, %v1774, 0
      %v1848 = vsel %vm483, %v1781, 0
      %v1850 = vshrl.u32 %v1817, 16
      %v1852 = vshll.u32 %v1817, 16
      %v1854 = vrot.slane %v1852, 1
      %v1855 = vor.u32 %v1850, %v1854
      %v1857 = vshll.u32 %v1833, 16
      %v1859 = vrot.slane %v1857, 1
      %v1860 = vsel %vm518, %v1855, %v1859
      %v1862 = vshrl.u32 %v1818, 16
      %v1864 = vshll.u32 %v1818, 16
      %v1866 = vrot.slane %v1864, 1
      %v1867 = vor.u32 %v1862, %v1866
      %v1869 = vshll.u32 %v1834, 16
      %v1871 = vrot.slane %v1869, 1
      %v1872 = vsel %vm518, %v1867, %v1871
      %v1874 = vshrl.u32 %v1819, 16
      %v1876 = vshll.u32 %v1819, 16
      %v1878 = vrot.slane %v1876, 1
      %v1879 = vor.u32 %v1874, %v1878
      %v1881 = vshll.u32 %v1835, 16
      %v1883 = vrot.slane %v1881, 1
      %v1884 = vsel %vm518, %v1879, %v1883
      %v1886 = vshrl.u32 %v1820, 16
      %v1888 = vshll.u32 %v1820, 16
      %v1890 = vrot.slane %v1888, 1
      %v1891 = vor.u32 %v1886, %v1890
      %v1893 = vshll.u32 %v1836, 16
      %v1895 = vrot.slane %v1893, 1
      %v1896 = vsel %vm518, %v1891, %v1895
      %v1898 = vshrl.u32 %v1821, 16
      %v1900 = vshll.u32 %v1821, 16
      %v1902 = vrot.slane %v1900, 1
      %v1903 = vor.u32 %v1898, %v1902
      %v1905 = vshll.u32 %v1837, 16
      %v1907 = vrot.slane %v1905, 1
      %v1908 = vsel %vm518, %v1903, %v1907
      %v1910 = vshrl.u32 %v1822, 16
      %v1912 = vshll.u32 %v1822, 16
      %v1914 = vrot.slane %v1912, 1
      %v1915 = vor.u32 %v1910, %v1914
      %v1917 = vshll.u32 %v1838, 16
      %v1919 = vrot.slane %v1917, 1
      %v1920 = vsel %vm518, %v1915, %v1919
      %v1922 = vshrl.u32 %v1823, 16
      %v1924 = vshll.u32 %v1823, 16
      %v1926 = vrot.slane %v1924, 1
      %v1927 = vor.u32 %v1922, %v1926
      %v1929 = vshll.u32 %v1839, 16
      %v1931 = vrot.slane %v1929, 1
      %v1932 = vsel %vm518, %v1927, %v1931
      %v1934 = vshrl.u32 %v1824, 16
      %v1936 = vshll.u32 %v1824, 16
      %v1938 = vrot.slane %v1936, 1
      %v1939 = vor.u32 %v1934, %v1938
      %v1941 = vshll.u32 %v1840, 16
      %v1943 = vrot.slane %v1941, 1
      %v1944 = vsel %vm518, %v1939, %v1943
      %v1946 = vshrl.u32 %v1825, 16
      %v1948 = vshll.u32 %v1825, 16
      %v1950 = vrot.slane %v1948, 1
      %v1951 = vor.u32 %v1946, %v1950
      %v1953 = vshll.u32 %v1841, 16
      %v1955 = vrot.slane %v1953, 1
      %v1956 = vsel %vm518, %v1951, %v1955
      %v1958 = vshrl.u32 %v1826, 16
      %v1960 = vshll.u32 %v1826, 16
      %v1962 = vrot.slane %v1960, 1
      %v1963 = vor.u32 %v1958, %v1962
      %v1965 = vshll.u32 %v1842, 16
      %v1967 = vrot.slane %v1965, 1
      %v1968 = vsel %vm518, %v1963, %v1967
      %v1970 = vshrl.u32 %v1827, 16
      %v1972 = vshll.u32 %v1827, 16
      %v1974 = vrot.slane %v1972, 1
      %v1975 = vor.u32 %v1970, %v1974
      %v1977 = vshll.u32 %v1843, 16
      %v1979 = vrot.slane %v1977, 1
      %v1980 = vsel %vm518, %v1975, %v1979
      %v1982 = vshrl.u32 %v1828, 16
      %v1984 = vshll.u32 %v1828, 16
      %v1986 = vrot.slane %v1984, 1
      %v1987 = vor.u32 %v1982, %v1986
      %v1989 = vshll.u32 %v1844, 16
      %v1991 = vrot.slane %v1989, 1
      %v1992 = vsel %vm518, %v1987, %v1991
      %v1994 = vshrl.u32 %v1829, 16
      %v1996 = vshll.u32 %v1829, 16
      %v1998 = vrot.slane %v1996, 1
      %v1999 = vor.u32 %v1994, %v1998
      %v2001 = vshll.u32 %v1845, 16
      %v2003 = vrot.slane %v2001, 1
      %v2004 = vsel %vm518, %v1999, %v2003
      %v2006 = vshrl.u32 %v1830, 16
      %v2008 = vshll.u32 %v1830, 16
      %v2010 = vrot.slane %v2008, 1
      %v2011 = vor.u32 %v2006, %v2010
      %v2013 = vshll.u32 %v1846, 16
      %v2015 = vrot.slane %v2013, 1
      %v2016 = vsel %vm518, %v2011, %v2015
      %v2018 = vshrl.u32 %v1831, 16
      %v2020 = vshll.u32 %v1831, 16
      %v2022 = vrot.slane %v2020, 1
      %v2023 = vor.u32 %v2018, %v2022
      %v2025 = vshll.u32 %v1847, 16
      %v2027 = vrot.slane %v2025, 1
      %v2028 = vsel %vm518, %v2023, %v2027
      %2029 = vrot.lane.b32.xlu0 %v1860, 4
      %v2030 = vpop.permute.xlu0 %2029
      %2031 = vrot.lane.b32.xlu0 %v1872, 4
      %v2032 = vpop.permute.xlu0 %2031
      %2033 = vrot.lane.b32.xlu0 %v1884, 4
      %v2034 = vpop.permute.xlu0 %2033
      %2035 = vrot.lane.b32.xlu0 %v1896, 4
      %v2036 = vpop.permute.xlu0 %2035
      %2037 = vrot.lane.b32.xlu0 %v1908, 4
      %v2038 = vpop.permute.xlu0 %2037
      %2039 = vrot.lane.b32.xlu0 %v1920, 4
      %v2040 = vpop.permute.xlu0 %2039
      %2041 = vrot.lane.b32.xlu0 %v1932, 4
      %v2042 = vpop.permute.xlu0 %2041
      %2043 = vrot.lane.b32.xlu0 %v1944, 4
      %v2044 = vpop.permute.xlu0 %2043
      %2045 = vrot.lane.b32.xlu0 %v1956, 4
      %v2046 = vpop.permute.xlu0 %2045
      %2047 = vrot.lane.b32.xlu0 %v1968, 4
      %v2048 = vpop.permute.xlu0 %2047
      %2049 = vrot.lane.b32.xlu0 %v1980, 4
      %v2050 = vpop.permute.xlu0 %2049
      %2051 = vrot.lane.b32.xlu0 %v1992, 4
      %v2052 = vpop.permute.xlu0 %2051
      %2053 = vrot.lane.b32.xlu0 %v2004, 4
      %v2054 = vpop.permute.xlu0 %2053
      %2055 = vrot.lane.b32.xlu0 %v2016, 4
      %v2056 = vpop.permute.xlu0 %2055
      %2057 = vrot.lane.b32.xlu0 %v2028, 4
      %v2058 = vpop.permute.xlu0 %2057
      %v2089 = vrot.slane %v1817, 1
      %v2090 = vrot.slane %v1833, 1
      %v2091 = vsel %vm775, %v2089, %v2090
      %v2092 = vrot.slane %v1818, 1
      %v2093 = vrot.slane %v1834, 1
      %v2094 = vsel %vm775, %v2092, %v2093
      %v2095 = vrot.slane %v1819, 1
      %v2096 = vrot.slane %v1835, 1
      %v2097 = vsel %vm775, %v2095, %v2096
      %v2098 = vrot.slane %v1820, 1
      %v2099 = vrot.slane %v1836, 1
      %v2100 = vsel %vm775, %v2098, %v2099
      %v2101 = vrot.slane %v1821, 1
      %v2102 = vrot.slane %v1837, 1
      %v2103 = vsel %vm775, %v2101, %v2102
      %v2104 = vrot.slane %v1822, 1
      %v2105 = vrot.slane %v1838, 1
      %v2106 = vsel %vm775, %v2104, %v2105
      %v2107 = vrot.slane %v1823, 1
      %v2108 = vrot.slane %v1839, 1
      %v2109 = vsel %vm775, %v2107, %v2108
      %v2110 = vrot.slane %v1824, 1
      %v2111 = vrot.slane %v1840, 1
      %v2112 = vsel %vm775, %v2110, %v2111
      %v2113 = vrot.slane %v1825, 1
      %v2114 = vrot.slane %v1841, 1
      %v2115 = vsel %vm775, %v2113, %v2114
      %v2116 = vrot.slane %v1826, 1
      %v2117 = vrot.slane %v1842, 1
      %v2118 = vsel %vm775, %v2116, %v2117
      %v2119 = vrot.slane %v1827, 1
      %v2120 = vrot.slane %v1843, 1
      %v2121 = vsel %vm775, %v2119, %v2120
      %v2122 = vrot.slane %v1828, 1
      %v2123 = vrot.slane %v1844, 1
      %v2124 = vsel %vm775, %v2122, %v2123
      %v2125 = vrot.slane %v1829, 1
      %v2126 = vrot.slane %v1845, 1
      %v2127 = vsel %vm775, %v2125, %v2126
      %v2128 = vrot.slane %v1830, 1
      %v2129 = vrot.slane %v1846, 1
      %v2130 = vsel %vm775, %v2128, %v2129
      %v2131 = vrot.slane %v1831, 1
      %v2132 = vrot.slane %v1847, 1
      %v2133 = vsel %vm775, %v2131, %v2132
      %2134 = vrot.lane.b32.xlu0 %v2091, 8
      %v2135 = vpop.permute.xlu0 %2134
      %2136 = vrot.lane.b32.xlu0 %v2094, 8
      %v2137 = vpop.permute.xlu0 %2136
      %2138 = vrot.lane.b32.xlu0 %v2097, 8
      %v2139 = vpop.permute.xlu0 %2138
      %2140 = vrot.lane.b32.xlu0 %v2100, 8
      %v2141 = vpop.permute.xlu0 %2140
      %2142 = vrot.lane.b32.xlu0 %v2103, 8
      %v2143 = vpop.permute.xlu0 %2142
      %2144 = vrot.lane.b32.xlu0 %v2106, 8
      %v2145 = vpop.permute.xlu0 %2144
      %2146 = vrot.lane.b32.xlu0 %v2109, 8
      %v2147 = vpop.permute.xlu0 %2146
      %2148 = vrot.lane.b32.xlu0 %v2112, 8
      %v2149 = vpop.permute.xlu0 %2148
      %2150 = vrot.lane.b32.xlu0 %v2115, 8
      %v2151 = vpop.permute.xlu0 %2150
      %2152 = vrot.lane.b32.xlu0 %v2118, 8
      %v2153 = vpop.permute.xlu0 %2152
      %2154 = vrot.lane.b32.xlu0 %v2121, 8
      %v2155 = vpop.permute.xlu0 %2154
      %2156 = vrot.lane.b32.xlu0 %v2124, 8
      %v2157 = vpop.permute.xlu0 %2156
      %2158 = vrot.lane.b32.xlu0 %v2127, 8
      %v2159 = vpop.permute.xlu0 %2158
      %2160 = vrot.lane.b32.xlu0 %v2130, 8
      %v2161 = vpop.permute.xlu0 %2160
      %2162 = vrot.lane.b32.xlu0 %v2133, 8
      %v2163 = vpop.permute.xlu0 %2162
      %2165 = vrot.lane.b32.xlu0 %v1817, 12
      %v2166 = vpop.permute.xlu0 %2165
      %2167 = vrot.lane.b32.xlu0 %v1818, 12
      %v2168 = vpop.permute.xlu0 %2167
      %2169 = vrot.lane.b32.xlu0 %v1819, 12
      %v2170 = vpop.permute.xlu0 %2169
      %2171 = vrot.lane.b32.xlu0 %v1820, 12
      %v2172 = vpop.permute.xlu0 %2171
      %2173 = vrot.lane.b32.xlu0 %v1821, 12
      %v2174 = vpop.permute.xlu0 %2173
      %2175 = vrot.lane.b32.xlu0 %v1822, 12
      %v2176 = vpop.permute.xlu0 %2175
      %2177 = vrot.lane.b32.xlu0 %v1823, 12
      %v2178 = vpop.permute.xlu0 %2177
      %2179 = vrot.lane.b32.xlu0 %v1824, 12
      %v2180 = vpop.permute.xlu0 %2179
      %2181 = vrot.lane.b32.xlu0 %v1825, 12
      %v2182 = vpop.permute.xlu0 %2181
      %2183 = vrot.lane.b32.xlu0 %v1826, 12
      %v2184 = vpop.permute.xlu0 %2183
      %2185 = vrot.lane.b32.xlu0 %v1827, 12
      %v2186 = vpop.permute.xlu0 %2185
      %2187 = vrot.lane.b32.xlu0 %v1828, 12
      %v2188 = vpop.permute.xlu0 %2187
      %2189 = vrot.lane.b32.xlu0 %v1829, 12
      %v2190 = vpop.permute.xlu0 %2189
      %2191 = vrot.lane.b32.xlu0 %v1830, 12
      %v2192 = vpop.permute.xlu0 %2191
      %2193 = vrot.lane.b32.xlu0 %v1831, 12
      %v2194 = vpop.permute.xlu0 %2193
      %2195 = vrot.lane.b32.xlu0 %v1832, 12
      %v2196 = vpop.permute.xlu0 %2195
      %v2198 = vshrl.u32 %v1832, 16
      %v2200 = vshll.u32 %v1832, 16
      %v2202 = vrot.slane %v2200, 1
      %v2203 = vor.u32 %v2198, %v2202
      %v2205 = vshll.u32 %v1848, 16
      %v2207 = vrot.slane %v2205, 1
      %v2208 = vsel %vm518, %v2203, %v2207
      %2209 = vrot.lane.b32.xlu0 %v1860, 16
      %v2210 = vpop.permute.xlu0 %2209
      %2211 = vrot.lane.b32.xlu0 %v1872, 16
      %v2212 = vpop.permute.xlu0 %2211
      %2213 = vrot.lane.b32.xlu0 %v1884, 16
      %v2214 = vpop.permute.xlu0 %2213
      %2215 = vrot.lane.b32.xlu0 %v1896, 16
      %v2216 = vpop.permute.xlu0 %2215
      %2217 = vrot.lane.b32.xlu0 %v1908, 16
      %v2218 = vpop.permute.xlu0 %2217
      %2219 = vrot.lane.b32.xlu0 %v1920, 16
      %v2220 = vpop.permute.xlu0 %2219
      %2221 = vrot.lane.b32.xlu0 %v1932, 16
      %v2222 = vpop.permute.xlu0 %2221
      %2223 = vrot.lane.b32.xlu0 %v1944, 16
      %v2224 = vpop.permute.xlu0 %2223
      %2225 = vrot.lane.b32.xlu0 %v1956, 16
      %v2226 = vpop.permute.xlu0 %2225
      %2227 = vrot.lane.b32.xlu0 %v1968, 16
      %v2228 = vpop.permute.xlu0 %2227
      %2229 = vrot.lane.b32.xlu0 %v1980, 16
      %v2230 = vpop.permute.xlu0 %2229
      %2231 = vrot.lane.b32.xlu0 %v1992, 16
      %v2232 = vpop.permute.xlu0 %2231
      %2233 = vrot.lane.b32.xlu0 %v2004, 16
      %v2234 = vpop.permute.xlu0 %2233
      %2235 = vrot.lane.b32.xlu0 %v2016, 16
      %v2236 = vpop.permute.xlu0 %2235
      %2237 = vrot.lane.b32.xlu0 %v2028, 16
      %v2238 = vpop.permute.xlu0 %2237
      %2239 = vrot.lane.b32.xlu0 %v2208, 16
      %v2240 = vpop.permute.xlu0 %2239
      %v2242 = vrot.slane %v1832, 1
      %v2243 = vrot.slane %v1848, 1
      %v2244 = vsel %vm775, %v2242, %v2243
      %2245 = vrot.lane.b32.xlu0 %v2091, 20
      %v2246 = vpop.permute.xlu0 %2245
      %2247 = vrot.lane.b32.xlu0 %v2094, 20
      %v2248 = vpop.permute.xlu0 %2247
      %2249 = vrot.lane.b32.xlu0 %v2097, 20
      %v2250 = vpop.permute.xlu0 %2249
      %2251 = vrot.lane.b32.xlu0 %v2100, 20
      %v2252 = vpop.permute.xlu0 %2251
      %2253 = vrot.lane.b32.xlu0 %v2103, 20
      %v2254 = vpop.permute.xlu0 %2253
      %2255 = vrot.lane.b32.xlu0 %v2106, 20
      %v2256 = vpop.permute.xlu0 %2255
      %2257 = vrot.lane.b32.xlu0 %v2109, 20
      %v2258 = vpop.permute.xlu0 %2257
      %2259 = vrot.lane.b32.xlu0 %v2112, 20
      %v2260 = vpop.permute.xlu0 %2259
      %2261 = vrot.lane.b32.xlu0 %v2115, 20
      %v2262 = vpop.permute.xlu0 %2261
      %2263 = vrot.lane.b32.xlu0 %v2118, 20
      %v2264 = vpop.permute.xlu0 %2263
      %2265 = vrot.lane.b32.xlu0 %v2121, 20
      %v2266 = vpop.permute.xlu0 %2265
      %2267 = vrot.lane.b32.xlu0 %v2124, 20
      %v2268 = vpop.permute.xlu0 %2267
      %2269 = vrot.lane.b32.xlu0 %v2127, 20
      %v2270 = vpop.permute.xlu0 %2269
      %2271 = vrot.lane.b32.xlu0 %v2130, 20
      %v2272 = vpop.permute.xlu0 %2271
      %2273 = vrot.lane.b32.xlu0 %v2133, 20
      %v2274 = vpop.permute.xlu0 %2273
      %2275 = vrot.lane.b32.xlu0 %v2244, 20
      %v2276 = vpop.permute.xlu0 %2275
      %2277 = vrot.lane.b32.xlu0 %v1818, 24
      %v2278 = vpop.permute.xlu0 %2277
      %2279 = vrot.lane.b32.xlu0 %v1819, 24
      %v2280 = vpop.permute.xlu0 %2279
      %2281 = vrot.lane.b32.xlu0 %v1820, 24
      %v2282 = vpop.permute.xlu0 %2281
      %2283 = vrot.lane.b32.xlu0 %v1821, 24
      %v2284 = vpop.permute.xlu0 %2283
      %2285 = vrot.lane.b32.xlu0 %v1822, 24
      %v2286 = vpop.permute.xlu0 %2285
      %2287 = vrot.lane.b32.xlu0 %v1823, 24
      %v2288 = vpop.permute.xlu0 %2287
      %2289 = vrot.lane.b32.xlu0 %v1824, 24
      %v2290 = vpop.permute.xlu0 %2289
      %2291 = vrot.lane.b32.xlu0 %v1825, 24
      %v2292 = vpop.permute.xlu0 %2291
      %2293 = vrot.lane.b32.xlu0 %v1826, 24
      %v2294 = vpop.permute.xlu0 %2293
      %2295 = vrot.lane.b32.xlu0 %v1827, 24
      %v2296 = vpop.permute.xlu0 %2295
      %2297 = vrot.lane.b32.xlu0 %v1828, 24
      %v2298 = vpop.permute.xlu0 %2297
      %2299 = vrot.lane.b32.xlu0 %v1829, 24
      %v2300 = vpop.permute.xlu0 %2299
      %2301 = vrot.lane.b32.xlu0 %v1830, 24
      %v2302 = vpop.permute.xlu0 %2301
      %2303 = vrot.lane.b32.xlu0 %v1831, 24
      %v2304 = vpop.permute.xlu0 %2303
      %2305 = vrot.lane.b32.xlu0 %v1832, 24
      %v2306 = vpop.permute.xlu0 %2305
      %2307 = vrot.lane.b32.xlu0 %v1872, 28
      %v2308 = vpop.permute.xlu0 %2307
      %2309 = vrot.lane.b32.xlu0 %v1884, 28
      %v2310 = vpop.permute.xlu0 %2309
      %2311 = vrot.lane.b32.xlu0 %v1896, 28
      %v2312 = vpop.permute.xlu0 %2311
      %2313 = vrot.lane.b32.xlu0 %v1908, 28
      %v2314 = vpop.permute.xlu0 %2313
      %2315 = vrot.lane.b32.xlu0 %v1920, 28
      %v2316 = vpop.permute.xlu0 %2315
      %2317 = vrot.lane.b32.xlu0 %v1932, 28
      %v2318 = vpop.permute.xlu0 %2317
      %2319 = vrot.lane.b32.xlu0 %v1944, 28
      %v2320 = vpop.permute.xlu0 %2319
      %2321 = vrot.lane.b32.xlu0 %v1956, 28
      %v2322 = vpop.permute.xlu0 %2321
      %2323 = vrot.lane.b32.xlu0 %v1968, 28
      %v2324 = vpop.permute.xlu0 %2323
      %2325 = vrot.lane.b32.xlu0 %v1980, 28
      %v2326 = vpop.permute.xlu0 %2325
      %2327 = vrot.lane.b32.xlu0 %v1992, 28
      %v2328 = vpop.permute.xlu0 %2327
      %2329 = vrot.lane.b32.xlu0 %v2004, 28
      %v2330 = vpop.permute.xlu0 %2329
      %2331 = vrot.lane.b32.xlu0 %v2016, 28
      %v2332 = vpop.permute.xlu0 %2331
      %2333 = vrot.lane.b32.xlu0 %v2028, 28
      %v2334 = vpop.permute.xlu0 %2333
      %2335 = vrot.lane.b32.xlu0 %v2208, 28
      %v2336 = vpop.permute.xlu0 %2335
      %2337 = vrot.lane.b32.xlu0 %v2094, 32
      %v2338 = vpop.permute.xlu0 %2337
      %2339 = vrot.lane.b32.xlu0 %v2097, 32
      %v2340 = vpop.permute.xlu0 %2339
      %2341 = vrot.lane.b32.xlu0 %v2100, 32
      %v2342 = vpop.permute.xlu0 %2341
      %2343 = vrot.lane.b32.xlu0 %v2103, 32
      %v2344 = vpop.permute.xlu0 %2343
      %2345 = vrot.lane.b32.xlu0 %v2106, 32
      %v2346 = vpop.permute.xlu0 %2345
      %2347 = vrot.lane.b32.xlu0 %v2109, 32
      %v2348 = vpop.permute.xlu0 %2347
      %2349 = vrot.lane.b32.xlu0 %v2112, 32
      %v2350 = vpop.permute.xlu0 %2349
      %2351 = vrot.lane.b32.xlu0 %v2115, 32
      %v2352 = vpop.permute.xlu0 %2351
      %2353 = vrot.lane.b32.xlu0 %v2118, 32
      %v2354 = vpop.permute.xlu0 %2353
      %2355 = vrot.lane.b32.xlu0 %v2121, 32
      %v2356 = vpop.permute.xlu0 %2355
      %2357 = vrot.lane.b32.xlu0 %v2124, 32
      %v2358 = vpop.permute.xlu0 %2357
      %2359 = vrot.lane.b32.xlu0 %v2127, 32
      %v2360 = vpop.permute.xlu0 %2359
      %2361 = vrot.lane.b32.xlu0 %v2130, 32
      %v2362 = vpop.permute.xlu0 %2361
      %2363 = vrot.lane.b32.xlu0 %v2133, 32
      %v2364 = vpop.permute.xlu0 %2363
      %2365 = vrot.lane.b32.xlu0 %v2244, 32
      %v2366 = vpop.permute.xlu0 %2365
      %v2368 = vsel %vm1065, %v1817, %v2030
      %v2370 = vsel %vm1065, %v1818, %v2032
      %v2372 = vsel %vm1065, %v1819, %v2034
      %v2374 = vsel %vm1065, %v1820, %v2036
      %v2376 = vsel %vm1065, %v1821, %v2038
      %v2378 = vsel %vm1065, %v1822, %v2040
      %v2380 = vsel %vm1065, %v1823, %v2042
      %v2382 = vsel %vm1065, %v1824, %v2044
      %v2384 = vsel %vm1065, %v1825, %v2046
      %v2386 = vsel %vm1065, %v1826, %v2048
      %v2388 = vsel %vm1065, %v1827, %v2050
      %v2390 = vsel %vm1065, %v1828, %v2052
      %v2392 = vsel %vm1065, %v1829, %v2054
      %v2394 = vsel %vm1065, %v1830, %v2056
      %v2396 = vsel %vm1065, %v1831, %v2058
      %v2398 = vsel %vm1098, %v2368, %v2135
      %v2400 = vsel %vm1098, %v2370, %v2137
      %v2402 = vsel %vm1098, %v2372, %v2139
      %v2404 = vsel %vm1098, %v2374, %v2141
      %v2406 = vsel %vm1098, %v2376, %v2143
      %v2408 = vsel %vm1098, %v2378, %v2145
      %v2410 = vsel %vm1098, %v2380, %v2147
      %v2412 = vsel %vm1098, %v2382, %v2149
      %v2414 = vsel %vm1098, %v2384, %v2151
      %v2416 = vsel %vm1098, %v2386, %v2153
      %v2418 = vsel %vm1098, %v2388, %v2155
      %v2420 = vsel %vm1098, %v2390, %v2157
      %v2422 = vsel %vm1098, %v2392, %v2159
      %v2424 = vsel %vm1098, %v2394, %v2161
      %v2426 = vsel %vm1098, %v2396, %v2163
      %v2428 = vsel %vm1131, %v1100, %v2166
      %v2430 = vsel %vm1131, %v2398, %v2168
      %v2432 = vsel %vm1131, %v2400, %v2170
      %v2434 = vsel %vm1131, %v2402, %v2172
      %v2436 = vsel %vm1131, %v2404, %v2174
      %v2438 = vsel %vm1131, %v2406, %v2176
      %v2440 = vsel %vm1131, %v2408, %v2178
      %v2442 = vsel %vm1131, %v2410, %v2180
      %v2444 = vsel %vm1131, %v2412, %v2182
      %v2446 = vsel %vm1131, %v2414, %v2184
      %v2448 = vsel %vm1131, %v2416, %v2186
      %v2450 = vsel %vm1131, %v2418, %v2188
      %v2452 = vsel %vm1131, %v2420, %v2190
      %v2454 = vsel %vm1131, %v2422, %v2192
      %v2456 = vsel %vm1131, %v2424, %v2194
      %v2458 = vsel %vm1131, %v2426, %v2196
      %v2460 = vsel %vm1164, %v2428, %v2210
      %v2462 = vsel %vm1164, %v2430, %v2212
      %v2464 = vsel %vm1164, %v2432, %v2214
      %v2466 = vsel %vm1164, %v2434, %v2216
      %v2468 = vsel %vm1164, %v2436, %v2218
      %v2470 = vsel %vm1164, %v2438, %v2220
      %v2472 = vsel %vm1164, %v2440, %v2222
      %v2474 = vsel %vm1164, %v2442, %v2224
      %v2476 = vsel %vm1164, %v2444, %v2226
      %v2478 = vsel %vm1164, %v2446, %v2228
      %v2480 = vsel %vm1164, %v2448, %v2230
      %v2482 = vsel %vm1164, %v2450, %v2232
      %v2484 = vsel %vm1164, %v2452, %v2234
      %v2486 = vsel %vm1164, %v2454, %v2236
      %v2488 = vsel %vm1164, %v2456, %v2238
      %v2490 = vsel %vm1164, %v2458, %v2240
      %v2492 = vsel %vm1197, %v2460, %v2246
      %v2494 = vsel %vm1197, %v2462, %v2248
      %v2496 = vsel %vm1197, %v2464, %v2250
      %v2498 = vsel %vm1197, %v2466, %v2252
      %v2500 = vsel %vm1197, %v2468, %v2254
      %v2502 = vsel %vm1197, %v2470, %v2256
      %v2504 = vsel %vm1197, %v2472, %v2258
      %v2506 = vsel %vm1197, %v2474, %v2260
      %v2508 = vsel %vm1197, %v2476, %v2262
      %v2510 = vsel %vm1197, %v2478, %v2264
      %v2512 = vsel %vm1197, %v2480, %v2266
      %v2514 = vsel %vm1197, %v2482, %v2268
      %v2516 = vsel %vm1197, %v2484, %v2270
      %v2518 = vsel %vm1197, %v2486, %v2272
      %v2520 = vsel %vm1197, %v2488, %v2274
      %v2522 = vsel %vm1197, %v2490, %v2276
      %v2524 = vsel %vm1230, %v2492, %v2278
      %v2526 = vsel %vm1230, %v2494, %v2280
      %v2528 = vsel %vm1230, %v2496, %v2282
      %v2530 = vsel %vm1230, %v2498, %v2284
      %v2532 = vsel %vm1230, %v2500, %v2286
      %v2534 = vsel %vm1230, %v2502, %v2288
      %v2536 = vsel %vm1230, %v2504, %v2290
      %v2538 = vsel %vm1230, %v2506, %v2292
      %v2540 = vsel %vm1230, %v2508, %v2294
      %v2542 = vsel %vm1230, %v2510, %v2296
      %v2544 = vsel %vm1230, %v2512, %v2298
      %v2546 = vsel %vm1230, %v2514, %v2300
      %v2548 = vsel %vm1230, %v2516, %v2302
      %v2550 = vsel %vm1230, %v2518, %v2304
      %v2552 = vsel %vm1230, %v2520, %v2306
      %v2553 = vsel %vm1230, %v2522, %v1000
      %v2555 = vsel %vm1263, %v2524, %v2308
      %v2557 = vsel %vm1263, %v2526, %v2310
      %v2559 = vsel %vm1263, %v2528, %v2312
      %v2561 = vsel %vm1263, %v2530, %v2314
      %v2563 = vsel %vm1263, %v2532, %v2316
      %v2565 = vsel %vm1263, %v2534, %v2318
      %v2567 = vsel %vm1263, %v2536, %v2320
      %v2569 = vsel %vm1263, %v2538, %v2322
      %v2571 = vsel %vm1263, %v2540, %v2324
      %v2573 = vsel %vm1263, %v2542, %v2326
      %v2575 = vsel %vm1263, %v2544, %v2328
      %v2577 = vsel %vm1263, %v2546, %v2330
      %v2579 = vsel %vm1263, %v2548, %v2332
      %v2581 = vsel %vm1263, %v2550, %v2334
      %v2583 = vsel %vm1263, %v2552, %v2336
      %v2584 = vsel %vm1263, %v2553, %v1032
      %v2586 = vsel %vm1296, %v2555, %v2338
      %v2588 = vsel %vm1296, %v2557, %v2340
      %v2590 = vsel %vm1296, %v2559, %v2342
      %v2592 = vsel %vm1296, %v2561, %v2344
      %v2594 = vsel %vm1296, %v2563, %v2346
      %v2596 = vsel %vm1296, %v2565, %v2348
      %v2598 = vsel %vm1296, %v2567, %v2350
      %v2600 = vsel %vm1296, %v2569, %v2352
      %v2602 = vsel %vm1296, %v2571, %v2354
      %v2604 = vsel %vm1296, %v2573, %v2356
      %v2606 = vsel %vm1296, %v2575, %v2358
      %v2608 = vsel %vm1296, %v2577, %v2360
      %v2610 = vsel %vm1296, %v2579, %v2362
      %v2612 = vsel %vm1296, %v2581, %v2364
      %v2614 = vsel %vm1296, %v2583, %v2366
      %v2615 = vsel %vm1296, %v2584, %v1064
      %v2616 = vld [vmem:[%s4] sm:$0xf]
      %v2617 = vld [vmem:[%s4 + $0x4] sm:$0xf]
      %v2618 = vld [vmem:[%s4 + $0x8] sm:$0xf]
      %v2619 = vld [vmem:[%s4 + $0xc] sm:$0xf]
      %v2620 = vld [vmem:[%s4 + $0x10] sm:$0x3]
      %v2626 = vunpack.c.l.b16 %v2616
      %v2627 = vunpack.c.l.b16 %v2617
      %v2628 = vunpack.c.l.b16 %v2618
      %v2629 = vunpack.c.l.b16 %v2619
      %v2630 = vunpack.c.l.b16 %v2620
      %v2631 = vpack.c.b16 %v2627, %v2626
      %v2632 = vpack.c.b16 %v2629, %v2628
      %v2633 = vpack.c.b16 %v2630, %v2630
      %v2636 = vsel %vm1349, %v2586, 0
      %v2638 = vsel %vm1349, %v2588, 0
      %v2640 = vsel %vm1349, %v2590, 0
      %v2642 = vsel %vm1349, %v2592, 0
      %v2644 = vsel %vm1349, %v2594, 0
      %v2646 = vsel %vm1349, %v2596, 0
      %v2648 = vsel %vm1349, %v2598, 0
      %v2650 = vsel %vm1349, %v2600, 0
      %v2652 = vsel %vm1349, %v2602, 0
      %v2654 = vsel %vm1349, %v2604, 0
      %v2656 = vsel %vm1349, %v2606, 0
      %v2658 = vsel %vm1349, %v2608, 0
      %v2660 = vsel %vm1349, %v2610, 0
      %v2662 = vsel %vm1349, %v2612, 0
      %v2664 = vsel %vm1349, %v2614, 0
      %v2666 = vsel %vm1349, %v2615, 0
      %v2669 = vsel %vm1382, %v2633, 0
      %2671 = vmatprep.subr.bf16.mxu0 0
      %2672 = vmatpush1.bf16.msra.mxu0 0
      %2673 = vmatprep.subr.bf16.mxu0 0
      %2674 = vmatpush1.bf16.msra.mxu0 0
      %2675 = vmatprep.subr.bf16.mxu0 0
      %2676 = vmatpush1.bf16.msra.mxu0 0
      %2677 = vmatprep.subr.bf16.mxu0 0
      %2678 = vmatpush1.bf16.msra.mxu0 0
      %2679 = vmatprep.subr.bf16.mxu0 0
      %2680 = vmatpush1.bf16.msra.mxu0 0
      %2681 = vmatprep.subr.bf16.mxu0 0
      %2682 = vmatpush1.bf16.msra.mxu0 %v2669
      %2683 = vmatprep.subr.bf16.mxu0 0
      %2684 = vmatpush1.bf16.msra.mxu0 %v2632
      %2685 = vmatprep.subr.bf16.mxu0 0
      %2686 = vmatpush1.bf16.msra.mxu0 %v2631
      %2687 = vmatprep.subr.bf16.mxu0 0
      %2688 = vmatpush2.bf16.msra.mxu0 0
      %2689 = vmatprep.subr.bf16.mxu0 0
      %2690 = vmatpush2.bf16.msra.mxu0 0
      %2691 = vmatprep.subr.bf16.mxu0 0
      %2692 = vmatpush2.bf16.msra.mxu0 0
      %2693 = vmatprep.subr.bf16.mxu0 0
      %2694 = vmatpush2.bf16.msra.mxu0 0
      %2695 = vmatprep.subr.bf16.mxu0 0
      %2696 = vmatpush2.bf16.msra.mxu0 0
      %2697 = vmatprep.subr.bf16.mxu0 0
      %2698 = vmatpush2.bf16.msra.mxu0 0
      %2699 = vmatprep.subr.bf16.mxu0 0
      %2700 = vmatpush2.bf16.msra.mxu0 0
      %2701 = vmatprep.subr.bf16.mxu0 0
      %2702 = vmatpush2.bf16.msra.mxu0 0
      %2703 = vmatprep.mubr.bf16.mxu0 0
      %2704 = vmatmul.mubr.bf16.gmra.mxu0 %v2636
      %v2705 = vpop.f32.mrf.mxu0
      %v2706 = vadd.f32 0.0, %v2705
      %v2707 = vpop.f32.mrf.mxu0
      %v2708 = vpop.f32.mrf.mxu0
      %v2709 = vadd.f32 0.0, %v2708
      %v2710 = vpop.f32.mrf.mxu0
      %2711 = vmatprep.mubr.bf16.mxu0 0
      %2712 = vmatmul.mubr.bf16.gmra.mxu0 %v2638
      %v2713 = vpop.f32.mrf.mxu0
      %v2714 = vadd.f32 0.0, %v2713
      %v2715 = vpop.f32.mrf.mxu0
      %v2716 = vpop.f32.mrf.mxu0
      %v2717 = vadd.f32 0.0, %v2716
      %v2718 = vpop.f32.mrf.mxu0
      %2719 = vmatprep.mubr.bf16.mxu0 0
      %2720 = vmatmul.mubr.bf16.gmra.mxu0 %v2640
      %v2721 = vpop.f32.mrf.mxu0
      %v2722 = vadd.f32 0.0, %v2721
      %v2723 = vpop.f32.mrf.mxu0
      %v2724 = vpop.f32.mrf.mxu0
      %v2725 = vadd.f32 0.0, %v2724
      %v2726 = vpop.f32.mrf.mxu0
      %2727 = vmatprep.mubr.bf16.mxu0 0
      %2728 = vmatmul.mubr.bf16.gmra.mxu0 %v2642
      %v2729 = vpop.f32.mrf.mxu0
      %v2730 = vadd.f32 0.0, %v2729
      %v2731 = vpop.f32.mrf.mxu0
      %v2732 = vpop.f32.mrf.mxu0
      %v2733 = vadd.f32 0.0, %v2732
      %v2734 = vpop.f32.mrf.mxu0
      %2735 = vmatprep.mubr.bf16.mxu0 0
      %2736 = vmatmul.mubr.bf16.gmra.mxu0 %v2644
      %v2737 = vpop.f32.mrf.mxu0
      %v2738 = vadd.f32 0.0, %v2737
      %v2739 = vpop.f32.mrf.mxu0
      %v2740 = vpop.f32.mrf.mxu0
      %v2741 = vadd.f32 0.0, %v2740
      %v2742 = vpop.f32.mrf.mxu0
      %2743 = vmatprep.mubr.bf16.mxu0 0
      %2744 = vmatmul.mubr.bf16.gmra.mxu0 %v2646
      %v2745 = vpop.f32.mrf.mxu0
      %v2746 = vadd.f32 0.0, %v2745
      %v2747 = vpop.f32.mrf.mxu0
      %v2748 = vpop.f32.mrf.mxu0
      %v2749 = vadd.f32 0.0, %v2748
      %v2750 = vpop.f32.mrf.mxu0
      %2751 = vmatprep.mubr.bf16.mxu0 0
      %2752 = vmatmul.mubr.bf16.gmra.mxu0 %v2648
      %v2753 = vpop.f32.mrf.mxu0
      %v2754 = vadd.f32 0.0, %v2753
      %v2755 = vpop.f32.mrf.mxu0
      %v2756 = vpop.f32.mrf.mxu0
      %v2757 = vadd.f32 0.0, %v2756
      %v2758 = vpop.f32.mrf.mxu0
      %2759 = vmatprep.mubr.bf16.mxu0 0
      %2760 = vmatmul.mubr.bf16.gmra.mxu0 %v2650
      %v2761 = vpop.f32.mrf.mxu0
      %v2762 = vadd.f32 0.0, %v2761
      %v2763 = vpop.f32.mrf.mxu0
      %v2764 = vpop.f32.mrf.mxu0
      %v2765 = vadd.f32 0.0, %v2764
      %v2766 = vpop.f32.mrf.mxu0
      %2767 = vmatprep.mubr.bf16.mxu0 0
      %2768 = vmatmul.mubr.bf16.gmra.mxu0 %v2652
      %v2769 = vpop.f32.mrf.mxu0
      %v2770 = vadd.f32 0.0, %v2769
      %v2771 = vpop.f32.mrf.mxu0
      %v2772 = vpop.f32.mrf.mxu0
      %v2773 = vadd.f32 0.0, %v2772
      %v2774 = vpop.f32.mrf.mxu0
      %2775 = vmatprep.mubr.bf16.mxu0 0
      %2776 = vmatmul.mubr.bf16.gmra.mxu0 %v2654
      %v2777 = vpop.f32.mrf.mxu0
      %v2778 = vadd.f32 0.0, %v2777
      %v2779 = vpop.f32.mrf.mxu0
      %v2780 = vpop.f32.mrf.mxu0
      %v2781 = vadd.f32 0.0, %v2780
      %v2782 = vpop.f32.mrf.mxu0
      %2783 = vmatprep.mubr.bf16.mxu0 0
      %2784 = vmatmul.mubr.bf16.gmra.mxu0 %v2656
      %v2785 = vpop.f32.mrf.mxu0
      %v2786 = vadd.f32 0.0, %v2785
      %v2787 = vpop.f32.mrf.mxu0
      %v2788 = vpop.f32.mrf.mxu0
      %v2789 = vadd.f32 0.0, %v2788
      %v2790 = vpop.f32.mrf.mxu0
      %2791 = vmatprep.mubr.bf16.mxu0 0
      %2792 = vmatmul.mubr.bf16.gmra.mxu0 %v2658
      %v2793 = vpop.f32.mrf.mxu0
      %v2794 = vadd.f32 0.0, %v2793
      %v2795 = vpop.f32.mrf.mxu0
      %v2796 = vpop.f32.mrf.mxu0
      %v2797 = vadd.f32 0.0, %v2796
      %v2798 = vpop.f32.mrf.mxu0
      %2799 = vmatprep.mubr.bf16.mxu0 0
      %2800 = vmatmul.mubr.bf16.gmra.mxu0 %v2660
      %v2801 = vpop.f32.mrf.mxu0
      %v2802 = vadd.f32 0.0, %v2801
      %v2803 = vpop.f32.mrf.mxu0
      %v2804 = vpop.f32.mrf.mxu0
      %v2805 = vadd.f32 0.0, %v2804
      %v2806 = vpop.f32.mrf.mxu0
      %2807 = vmatprep.mubr.bf16.mxu0 0
      %2808 = vmatmul.mubr.bf16.gmra.mxu0 %v2662
      %v2809 = vpop.f32.mrf.mxu0
      %v2810 = vadd.f32 0.0, %v2809
      %v2811 = vpop.f32.mrf.mxu0
      %v2812 = vpop.f32.mrf.mxu0
      %v2813 = vadd.f32 0.0, %v2812
      %v2814 = vpop.f32.mrf.mxu0
      %2815 = vmatprep.mubr.bf16.mxu0 0
      %2816 = vmatmul.mubr.bf16.gmra.mxu0 %v2664
      %v2817 = vpop.f32.mrf.mxu0
      %v2818 = vadd.f32 0.0, %v2817
      %v2819 = vpop.f32.mrf.mxu0
      %v2820 = vpop.f32.mrf.mxu0
      %v2821 = vadd.f32 0.0, %v2820
      %v2822 = vpop.f32.mrf.mxu0
      %2823 = vmatprep.mubr.bf16.mxu0 0
      %2824 = vmatmul.mubr.bf16.gmra.mxu0 %v2666
      %v2825 = vpop.f32.mrf.mxu0
      %v2826 = vadd.f32 0.0, %v2825
      %v2827 = vpop.f32.mrf.mxu0
      %v2828 = vpop.f32.mrf.mxu0
      %v2829 = vadd.f32 0.0, %v2828
      %v2830 = vpop.f32.mrf.mxu0
      %2831 = vdwg.mxu0
      %v2832 = vld [vmem:[%s5] sm:$0x1]
      %v2834 = vlaneseq
      %v2835 = vshrl.u32 %v2834, 7
      %v2836 = vsub.s32 0, %v2835
      %v2837 = vrot.slane %v2832, %v2836
      %v2839 = vmul.f32 %v2706, %v2837
      %v2840 = vmul.f32 %v2709, %v2837
      %v2841 = vmul.f32 %v2714, %v2837
      %v2842 = vmul.f32 %v2717, %v2837
      %v2843 = vmul.f32 %v2722, %v2837
      %v2844 = vmul.f32 %v2725, %v2837
      %v2845 = vmul.f32 %v2730, %v2837
      %v2846 = vmul.f32 %v2733, %v2837
      %v2847 = vmul.f32 %v2738, %v2837
      %v2848 = vmul.f32 %v2741, %v2837
      %v2849 = vmul.f32 %v2746, %v2837
      %v2850 = vmul.f32 %v2749, %v2837
      %v2851 = vmul.f32 %v2754, %v2837
      %v2852 = vmul.f32 %v2757, %v2837
      %v2853 = vmul.f32 %v2762, %v2837
      %v2854 = vmul.f32 %v2765, %v2837
      %v2855 = vmul.f32 %v2770, %v2837
      %v2856 = vmul.f32 %v2773, %v2837
      %v2857 = vmul.f32 %v2778, %v2837
      %v2858 = vmul.f32 %v2781, %v2837
      %v2859 = vmul.f32 %v2786, %v2837
      %v2860 = vmul.f32 %v2789, %v2837
      %v2861 = vmul.f32 %v2794, %v2837
      %v2862 = vmul.f32 %v2797, %v2837
      %v2863 = vmul.f32 %v2802, %v2837
      %v2864 = vmul.f32 %v2805, %v2837
      %v2865 = vmul.f32 %v2810, %v2837
      %v2866 = vmul.f32 %v2813, %v2837
      %v2867 = vmul.f32 %v2818, %v2837
      %v2868 = vmul.f32 %v2821, %v2837
      %v2869 = vmul.f32 %v2826, %v2837
      %v2870 = vmul.f32 %v2829, %v2837
      %v2871 = vld [vmem:[%s6] sm:$0x1]
      %v2873 = vlaneseq
      %v2874 = vshrl.u32 %v2873, 7
      %v2875 = vsub.s32 0, %v2874
      %v2876 = vrot.slane %v2871, %v2875
      %v2878 = vadd.f32 %v2839, %v2876
      %v2879 = vadd.f32 %v2840, %v2876
      %v2880 = vadd.f32 %v2841, %v2876
      %v2881 = vadd.f32 %v2842, %v2876
      %v2882 = vadd.f32 %v2843, %v2876
      %v2883 = vadd.f32 %v2844, %v2876
      %v2884 = vadd.f32 %v2845, %v2876
      %v2885 = vadd.f32 %v2846, %v2876
      %v2886 = vadd.f32 %v2847, %v2876
      %v2887 = vadd.f32 %v2848, %v2876
      %v2888 = vadd.f32 %v2849, %v2876
      %v2889 = vadd.f32 %v2850, %v2876
      %v2890 = vadd.f32 %v2851, %v2876
      %v2891 = vadd.f32 %v2852, %v2876
      %v2892 = vadd.f32 %v2853, %v2876
      %v2893 = vadd.f32 %v2854, %v2876
      %v2894 = vadd.f32 %v2855, %v2876
      %v2895 = vadd.f32 %v2856, %v2876
      %v2896 = vadd.f32 %v2857, %v2876
      %v2897 = vadd.f32 %v2858, %v2876
      %v2898 = vadd.f32 %v2859, %v2876
      %v2899 = vadd.f32 %v2860, %v2876
      %v2900 = vadd.f32 %v2861, %v2876
      %v2901 = vadd.f32 %v2862, %v2876
      %v2902 = vadd.f32 %v2863, %v2876
      %v2903 = vadd.f32 %v2864, %v2876
      %v2904 = vadd.f32 %v2865, %v2876
      %v2905 = vadd.f32 %v2866, %v2876
      %v2906 = vadd.f32 %v2867, %v2876
      %v2907 = vadd.f32 %v2868, %v2876
      %v2908 = vadd.f32 %v2869, %v2876
      %v2909 = vadd.f32 %v2870, %v2876
      %v2910 = vadd.f32 %v2878, %v280
      %v2911 = vadd.f32 %v2879, %v281
      %v2912 = vadd.f32 %v2880, %v282
      %v2913 = vadd.f32 %v2881, %v283
      %v2914 = vadd.f32 %v2882, %v284
      %v2915 = vadd.f32 %v2883, %v285
      %v2916 = vadd.f32 %v2884, %v286
      %v2917 = vadd.f32 %v2885, %v287
      %v2918 = vadd.f32 %v2886, %v288
      %v2919 = vadd.f32 %v2887, %v289
      %v2920 = vadd.f32 %v2888, %v290
      %v2921 = vadd.f32 %v2889, %v291
      %v2922 = vadd.f32 %v2890, %v292
      %v2923 = vadd.f32 %v2891, %v293
      %v2924 = vadd.f32 %v2892, %v294
      %v2925 = vadd.f32 %v2893, %v295
      %v2926 = vadd.f32 %v2894, %v296
      %v2927 = vadd.f32 %v2895, %v297
      %v2928 = vadd.f32 %v2896, %v298
      %v2929 = vadd.f32 %v2897, %v299
      %v2930 = vadd.f32 %v2898, %v300
      %v2931 = vadd.f32 %v2899, %v301
      %v2932 = vadd.f32 %v2900, %v302
      %v2933 = vadd.f32 %v2901, %v303
      %v2934 = vadd.f32 %v2902, %v304
      %v2935 = vadd.f32 %v2903, %v305
      %v2936 = vadd.f32 %v2904, %v306
      %v2937 = vadd.f32 %v2905, %v307
      %v2938 = vadd.f32 %v2906, %v308
      %v2939 = vadd.f32 %v2907, %v309
      %v2940 = vadd.f32 %v2908, %v310
      %v2941 = vadd.f32 %v2909, %v311
      %v2942 = vmax.f32 %v2910, 0.0
      %v2943 = vmax.f32 %v2911, 0.0
      %v2944 = vmax.f32 %v2912, 0.0
      %v2945 = vmax.f32 %v2913, 0.0
      %v2946 = vmax.f32 %v2914, 0.0
      %v2947 = vmax.f32 %v2915, 0.0
      %v2948 = vmax.f32 %v2916, 0.0
      %v2949 = vmax.f32 %v2917, 0.0
      %v2950 = vmax.f32 %v2918, 0.0
      %v2951 = vmax.f32 %v2919, 0.0
      %v2952 = vmax.f32 %v2920, 0.0
      %v2953 = vmax.f32 %v2921, 0.0
      %v2954 = vmax.f32 %v2922, 0.0
      %v2955 = vmax.f32 %v2923, 0.0
      %v2956 = vmax.f32 %v2924, 0.0
      %v2957 = vmax.f32 %v2925, 0.0
      %v2958 = vmax.f32 %v2926, 0.0
      %v2959 = vmax.f32 %v2927, 0.0
      %v2960 = vmax.f32 %v2928, 0.0
      %v2961 = vmax.f32 %v2929, 0.0
      %v2962 = vmax.f32 %v2930, 0.0
      %v2963 = vmax.f32 %v2931, 0.0
      %v2964 = vmax.f32 %v2932, 0.0
      %v2965 = vmax.f32 %v2933, 0.0
      %v2966 = vmax.f32 %v2934, 0.0
      %v2967 = vmax.f32 %v2935, 0.0
      %v2968 = vmax.f32 %v2936, 0.0
      %v2969 = vmax.f32 %v2937, 0.0
      %v2970 = vmax.f32 %v2938, 0.0
      %v2971 = vmax.f32 %v2939, 0.0
      %v2972 = vmax.f32 %v2940, 0.0
      %v2973 = vmax.f32 %v2941, 0.0
      %2974 = vst.msk [vmem:[%s278] sm:$0xff] %vm1065, %v2942
      %2975 = vst.msk [vmem:[%s278 + $0x8] sm:$0xff] %vm1065, %v2943
      %2976 = vst.msk [vmem:[%s278 + $0x10] sm:$0xff] %vm1065, %v2944
      %2977 = vst.msk [vmem:[%s278 + $0x18] sm:$0xff] %vm1065, %v2945
      %2978 = vst.msk [vmem:[%s278 + $0x20] sm:$0xff] %vm1065, %v2946
      %2979 = vst.msk [vmem:[%s278 + $0x28] sm:$0xff] %vm1065, %v2947
      %2980 = vst.msk [vmem:[%s278 + $0x30] sm:$0xff] %vm1065, %v2948
      %2981 = vst.msk [vmem:[%s278 + $0x38] sm:$0xff] %vm1065, %v2949
      %2982 = vst.msk [vmem:[%s278 + $0x40] sm:$0xff] %vm1065, %v2950
      %2983 = vst.msk [vmem:[%s278 + $0x48] sm:$0xff] %vm1065, %v2951
      %2984 = vst.msk [vmem:[%s278 + $0x50] sm:$0xff] %vm1065, %v2952
      %2985 = vst.msk [vmem:[%s278 + $0x58] sm:$0xff] %vm1065, %v2953
      %2986 = vst.msk [vmem:[%s278 + $0x60] sm:$0xff] %vm1065, %v2954
      %2987 = vst.msk [vmem:[%s278 + $0x68] sm:$0xff] %vm1065, %v2955
      %2988 = vst.msk [vmem:[%s278 + $0x70] sm:$0xff] %vm1065, %v2956
      %2989 = vst.msk [vmem:[%s278 + $0x78] sm:$0xff] %vm1065, %v2957
      %2990 = vst.msk [vmem:[%s278 + $0x80] sm:$0xff] %vm1065, %v2958
      %2991 = vst.msk [vmem:[%s278 + $0x88] sm:$0xff] %vm1065, %v2959
      %2992 = vst.msk [vmem:[%s278 + $0x90] sm:$0xff] %vm1065, %v2960
      %2993 = vst.msk [vmem:[%s278 + $0x98] sm:$0xff] %vm1065, %v2961
      %2994 = vst.msk [vmem:[%s278 + $0xa0] sm:$0xff] %vm1065, %v2962
      %2995 = vst.msk [vmem:[%s278 + $0xa8] sm:$0xff] %vm1065, %v2963
      %2996 = vst.msk [vmem:[%s278 + $0xb0] sm:$0xff] %vm1065, %v2964
      %2997 = vst.msk [vmem:[%s278 + $0xb8] sm:$0xff] %vm1065, %v2965
      %2998 = vst.msk [vmem:[%s278 + $0xc0] sm:$0xff] %vm1065, %v2966
      %2999 = vst.msk [vmem:[%s278 + $0xc8] sm:$0xff] %vm1065, %v2967
      %3000 = vst.msk [vmem:[%s278 + $0xd0] sm:$0xff] %vm1065, %v2968
      %3001 = vst.msk [vmem:[%s278 + $0xd8] sm:$0xff] %vm1065, %v2969
      %3002 = vst.msk [vmem:[%s278 + $0xe0] sm:$0xff] %vm1065, %v2970
      %3003 = vst.msk [vmem:[%s278 + $0xe8] sm:$0xff] %vm1065, %v2971
      %3004 = vst.msk [vmem:[%s278 + $0xf0] sm:$0xff] %vm1065, %v2972
      %3005 = vst.msk [vmem:[%s278 + $0xf8] sm:$0xff] %vm1065, %v2973
      %p3006 = scmp.lt.s32.totalorder %s18, 1
      %s3007 = scalar_select %p3006, %s18, 1
      %s3008 = smul.addr %s3007, 32
      %s3009 = smul.addr %s3008, 8
      %s3010 = scalar_lea.vmem %s7, %s3009
      // Predicated region
      $region49: #{resnet_basicblock_forward.1} parent=47 // pred_check
        %p3011 = pneg %p188
      $region50: #{resnet_basicblock_forward.1} parent=47 // pred_check_branch
        %3013 = sbr.rel (%p3011) target = $region52
      $region51: #{resnet_basicblock_forward.1} parent=47 // pred_region
        _
      $region52: #{resnet_basicblock_forward.1} parent=47 // pred_fallthru
        _
    $region48: #{resnet_basicblock_forward.1} parent=5 // pred_fallthru
      _
    %p3014 = scmp.le.s32.totalorder 2, %s13
    // Predicated region
    $region53: #{resnet_basicblock_forward.1} parent=5 // pred_check
      %p3015 = pneg %p3014
    $region54: #{resnet_basicblock_forward.1} parent=5 // pred_check_branch
      %3017 = sbr.rel (%p3015) target = $region56
    $region55: #{resnet_basicblock_forward.1} parent=5 // pred_region
      %s3018 = ssub.s32 %s13, 2
      // Predicated region
      $region57: #{resnet_basicblock_forward.1} parent=55 // pred_check
        %p3019 = pneg %p194
      $region58: #{resnet_basicblock_forward.1} parent=55 // pred_check_branch
        %3021 = sbr.rel (%p3019) target = $region60
      $region59: #{resnet_basicblock_forward.1} parent=55 // pred_region
        %p3022 = scmp.lt.s32.totalorder %s19, 1
        %s3023 = scalar_select %p3022, %s19, 1
        %s3024 = smul.addr %s3023, 32
        %s3025 = smul.addr %s3024, 8
        %s3026 = scalar_lea.vmem %s7, %s3025
      $region60: #{resnet_basicblock_forward.1} parent=55 // pred_fallthru
        _
    $region56: #{resnet_basicblock_forward.1} parent=5 // pred_fallthru
      _
  $region6: #{resnet_basicblock_forward.1} parent=0 // loop_footer
    %s17 = sadd.s32 1, %s13
  $region7: #{resnet_basicblock_forward.1} parent=0 // loop_footer_branch
    %12 = sbr.rel target = $region3
  $region8: #{resnet_basicblock_forward.1} parent=0 // loop_exit
    _

</llo_original>
